<compile_context>
chip_gen: v7x
topology: tpu7x:2x2x1
jax: 0.10.0
libtpu: 0.0.40
codegen_flags: <defaults>
</compile_context>

<pallas_src>
import functools

import jax
import jax.numpy as jnp
from jax.experimental import pallas as pl
from jax.experimental.pallas import tpu as pltpu


def _segmap_encoder_kernel(xcol_ref, w1_ref, b1_ref, w2_ref, o_ref,
                           *, H, W, K, pad, c2):
    """Fused SegMapEncoder forward for one batch element.

    xcol_ref: (1, H*W, K*K*Cin)      f32   im2col'd input (tap-major, ci-minor)
    w1_ref  : (K*K*Cin, 128)         f32   shared-conv weight (matches xcol cols)
    b1_ref  : (1, 128)               f32   shared-conv bias
    w2_ref  : (128, K*K*2*Cout)      bf16  fused [per-tap: gamma|mu] weights
    o_ref   : (1, H+2p, W+2p, 2*Cout) f32  halo-padded [gamma|mu] accumulator
    """
    # ---- stage 1: shared conv as ONE matmul (taps folded into contraction) ----
    acc1 = jnp.dot(xcol_ref[0], w1_ref[...], preferred_element_type=jnp.float32)
    actv = jnp.maximum(acc1 + b1_ref[...], 0.0).astype(jnp.bfloat16)  # (H*W, 128)

    # ---- stage 2: gamma|mu convs as ONE matmul (taps folded into N) ----------
    # y[:, tap*c2:(tap+1)*c2] = actv @ W_tap  for every tap at once.
    y = jnp.dot(actv, w2_ref[...], preferred_element_type=jnp.float32)  # (H*W, K*K*c2)

    # ---- scatter-accumulate the 9 narrow column slices with spatial shifts ---
    # out[h, w] = sum_tap  Y_tap[h + kh - pad, w + kw - pad]   (zero outside),
    # realised by accumulating Y_tap into a halo-padded output block and
    # letting the wrapper discard the halo.
    o_ref[...] = jnp.zeros_like(o_ref)
    for tap in range(K * K):
        kh, kw = divmod(tap, K)
        yt = y[:, tap * c2:(tap + 1) * c2].reshape(H, W, c2)
        r0 = 2 * pad - kh
        c0 = 2 * pad - kw
        o_ref[0, r0:r0 + H, c0:c0 + W, :] += yt


def segmap_encoder_fused(x_nhwc, w1col, b1, w2_all, b2, kernel_size):
    """Fused shared+ReLU / gamma / mu convs for NHWC input.

    x_nhwc : (B, H, W, Cin) f32
    w1col  : (K*K*Cin, 128) f32       row index = tap*Cin + ci, tap = kh*K + kw
    b1     : (128,) f32
    w2_all : (128, K*K*2*Cout) bf16   col index = tap*2*Cout + c ([gamma|mu] per tap)
    b2     : (2*Cout,) f32
    returns: (B, H, W, 2*Cout) f32    ([:Cout]=gamma, [Cout:]=beta)
    """
    B, H, W, Cin = x_nhwc.shape
    K = kernel_size
    pad = K // 2
    hidden = w1col.shape[-1]
    KKCin = w1col.shape[0]
    NCOL = w2_all.shape[-1]
    C2 = NCOL // (K * K)
    Hp, Wp = H + 2 * pad, W + 2 * pad

    # im2col built XLA-side (input is tiny): columns ordered tap-major, ci-minor
    # to match w1col rows.  Removes all in-kernel padded-input handling.
    xp = jnp.pad(x_nhwc, ((0, 0), (pad, pad), (pad, pad), (0, 0)))
    patches = [xp[:, kh:kh + H, kw:kw + W, :]
               for kh in range(K) for kw in range(K)]
    xcol = jnp.concatenate(patches, axis=-1).reshape(B, H * W, KKCin)

    b1_2d = b1.reshape(1, hidden).astype(jnp.float32)

    kernel = functools.partial(_segmap_encoder_kernel,
                               H=H, W=W, K=K, pad=pad, c2=C2)

    flops = 2 * B * H * W * (KKCin * hidden + hidden * NCOL)
    bytes_accessed = (xcol.size * 4 + w1col.size * 4 + b1_2d.size * 4
                      + w2_all.size * 2 + B * Hp * Wp * C2 * 4)

    out_pad = pl.pallas_call(
        kernel,
        out_shape=jax.ShapeDtypeStruct((B, Hp, Wp, C2), jnp.float32),
        grid_spec=pltpu.PrefetchScalarGridSpec(
            num_scalar_prefetch=0,
            grid=(B,),
            in_specs=[
                pl.BlockSpec((1, H * W, KKCin), lambda b: (b, 0, 0)),
                pl.BlockSpec((KKCin, hidden), lambda b: (0, 0)),
                pl.BlockSpec((1, hidden), lambda b: (0, 0)),
                pl.BlockSpec((hidden, NCOL), lambda b: (0, 0)),
            ],
            out_specs=pl.BlockSpec((1, Hp, Wp, C2), lambda b: (b, 0, 0, 0)),
        ),
        compiler_params=pltpu.CompilerParams(
            dimension_semantics=("parallel",)),
        cost_estimate=pl.CostEstimate(flops=flops, transcendentals=0,
                                      bytes_accessed=bytes_accessed),
    )(xcol, w1col, b1_2d, w2_all)

    # Discard halo, add fused [gamma|mu] bias (tiny XLA epilogue).
    out = out_pad[:, pad:pad + H, pad:pad + W, :] + b2.reshape(1, 1, 1, C2)
    return out


class SegMapEncoderPallas:
    """JAX/Pallas equivalent of SegMapEncoder (use_equalized_lr=False path)."""

    HIDDEN = 128

    def __init__(self, num_labels, out_channels, kernel_size, key):
        self.num_labels = num_labels
        self.out_channels = out_channels
        self.kernel_size = kernel_size
        K = kernel_size
        k1, k2, k3, k4, k5, k6 = jax.random.split(key, 6)

        def init_conv(kw_key, kb_key, cin, cout):
            # Deterministic init mimicking nn.Conv2d default.
            fan_in = cin * K * K
            bound = 1.0 / jnp.sqrt(fan_in)
            # weight stored tap-major: (K*K, Cin, Cout), tap = kh*K + kw
            w = jax.random.uniform(kw_key, (K * K, cin, cout),
                                   minval=-bound, maxval=bound,
                                   dtype=jnp.float32)
            b = jax.random.uniform(kb_key, (cout,),
                                   minval=-bound, maxval=bound,
                                   dtype=jnp.float32)
            return w, b

        self.w_shared, self.b_shared = init_conv(k1, k2, num_labels, self.HIDDEN)
        self.w_gamma, self.b_gamma = init_conv(k3, k4, self.HIDDEN, out_channels)
        self.w_mu, self.b_mu = init_conv(k5, k6, self.HIDDEN, out_channels)

        # Kernel-ready weights.
        # Stage 1: (K*K, Cin, 128) -> (K*K*Cin, 128), rows tap-major / ci-minor.
        self.w1col = self.w_shared.reshape(K * K * num_labels, self.HIDDEN)
        # Stage 2: gamma|mu concatenated per tap, taps folded into N:
        #   (K*K, 128, 2*Cout) -> (128, K*K*2*Cout), cols tap-major.
        w2 = jnp.concatenate([self.w_gamma, self.w_mu], axis=-1)
        self.w2_all = jnp.transpose(w2, (1, 0, 2)).reshape(
            self.HIDDEN, K * K * 2 * out_channels).astype(jnp.bfloat16)
        self.b2_fused = jnp.concatenate([self.b_gamma, self.b_mu], axis=0)

    def __call__(self, segmentation_map_nchw):
        # NCHW -> NHWC for the kernel (glue, not hot path).
        x = jnp.transpose(segmentation_map_nchw, (0, 2, 3, 1)).astype(jnp.float32)

        out = segmap_encoder_fused(x, self.w1col, self.b_shared,
                                   self.w2_all, self.b2_fused,
                                   self.kernel_size)

        c = self.out_channels
        gamma = jnp.transpose(out[..., :c], (0, 3, 1, 2))
        beta = jnp.transpose(out[..., c:], (0, 3, 1, 2))
        return gamma, beta


def _reference_conv_nhwc(x, w_taps, b, K, relu, use_bf16):
    """Pure-JAX reference (lax conv), optionally with bf16 operands /
    f32 accumulation to match the kernel's stage-2 precision."""
    pad = K // 2
    cin, cout = w_taps.shape[1], w_taps.shape[2]
    w_hwio = w_taps.reshape(K, K, cin, cout)
    if use_bf16:
        x = x.astype(jnp.bfloat16)
        w_hwio = w_hwio.astype(jnp.bfloat16)
    out = jax.lax.conv_general_dilated(
        x, w_hwio, window_strides=(1, 1),
        padding=((pad, pad), (pad, pad)),
        dimension_numbers=("NHWC", "HWIO", "NHWC"),
        preferred_element_type=jnp.float32)
    out = out + b
    if relu:
        out = jnp.maximum(out, 0.0)
    return out


if __name__ == "__main__":
    key = jax.random.PRNGKey(0)
    k_params, k_input = jax.random.split(key)

    batch, num_labels, H, W = 2, 4, 16, 16
    out_channels, kernel_size = 8, 3

    enc = SegMapEncoderPallas(num_labels, out_channels, kernel_size, k_params)

    seg_map = jax.random.uniform(k_input, (batch, num_labels, H, W),
                                 dtype=jnp.float32)

    gamma, beta = enc(seg_map)
    gamma = jax.block_until_ready(gamma)
    beta = jax.block_until_ready(beta)

    assert gamma.shape == (batch, out_channels, H, W), gamma.shape
    assert beta.shape == (batch, out_channels, H, W), beta.shape

    # Cross-check against a pure-JAX conv reference with matching precision
    # (stage 1 in f32, stage 2 with bf16 operands / f32 accumulation).
    x_nhwc = jnp.transpose(seg_map, (0, 2, 3, 1))
    actv_ref = _reference_conv_nhwc(x_nhwc, enc.w_shared, enc.b_shared,
                                    kernel_size, relu=True, use_bf16=False)
    gamma_ref = _reference_conv_nhwc(actv_ref, enc.w_gamma, enc.b_gamma,
                                     kernel_size, relu=False, use_bf16=True)
    beta_ref = _reference_conv_nhwc(actv_ref, enc.w_mu, enc.b_mu,
                                    kernel_size, relu=False, use_bf16=True)
    gamma_ref = jnp.transpose(gamma_ref, (0, 3, 1, 2))
    beta_ref = jnp.transpose(beta_ref, (0, 3, 1, 2))

    assert jnp.allclose(gamma, gamma_ref, atol=2e-2, rtol=2e-2)
    assert jnp.allclose(beta, beta_ref, atol=2e-2, rtol=2e-2)

    print("KERNEL_OK")
</pallas_src>

<mosaic_0001>
module attributes {stable_mosaic.version = 11 : i64} {
  func.func @_segmap_encoder_kernel(%arg0: i32, %arg1: memref<1x256x36xf32, #tpu.memory_space<vmem>>, %arg2: memref<36x128xf32, #tpu.memory_space<vmem>>, %arg3: memref<1x128xf32, #tpu.memory_space<vmem>>, %arg4: memref<128x144xbf16, #tpu.memory_space<vmem>>, %arg5: memref<1x18x18x16xf32, #tpu.memory_space<vmem>>) attributes {dimension_semantics = [#tpu.dimension_semantics<parallel>], iteration_bounds = array<i64: 2>, scalar_prefetch = 0 : i64, scratch_operands = 0 : i64, tpu.core_type = #tpu.core_type<tc>, window_params = [{transform_indices = @transform_0, window_bounds = array<i64: 1, 256, 36>}, {pipeline_mode = #tpu.pipeline_mode<synchronous>, transform_indices = @transform_1, window_bounds = array<i64: 36, 128>}, {pipeline_mode = #tpu.pipeline_mode<synchronous>, transform_indices = @transform_2, window_bounds = array<i64: 1, 128>}, {pipeline_mode = #tpu.pipeline_mode<synchronous>, transform_indices = @transform_3, window_bounds = array<i64: 128, 144>}, {transform_indices = @transform_4, window_bounds = array<i64: 1, 18, 18, 16>}]} {
    %c0 = arith.constant 0 : index
    %c0_0 = arith.constant 0 : index
    %c0_1 = arith.constant 0 : index
    %0 = vector.load %arg1[%c0, %c0_0, %c0_1] : memref<1x256x36xf32, #tpu.memory_space<vmem>>, vector<1x256x36xf32>
    %1 = vector.shape_cast %0 : vector<1x256x36xf32> to vector<256x36xf32>
    %c0_2 = arith.constant 0 : index
    %c0_3 = arith.constant 0 : index
    %2 = vector.load %arg2[%c0_2, %c0_3] : memref<36x128xf32, #tpu.memory_space<vmem>>, vector<36x128xf32>
    %cst = arith.constant dense<0.000000e+00> : vector<256x128xf32>
    %3 = tpu.matmul %1, %2, %cst {dimension_numbers = #tpu.dot_dimension_numbers<[1], [0], [0], [1], [0, 0, 1, 1], [], []>} : vector<256x36xf32>, vector<36x128xf32>, vector<256x128xf32> -> vector<256x128xf32>
    %c0_4 = arith.constant 0 : index
    %c0_5 = arith.constant 0 : index
    %4 = vector.load %arg3[%c0_4, %c0_5] : memref<1x128xf32, #tpu.memory_space<vmem>>, vector<1x128xf32>
    %5 = vector.broadcast %4 : vector<1x128xf32> to vector<256x128xf32>
    %6 = arith.addf %3, %5 : vector<256x128xf32>
    %cst_6 = arith.constant 0.000000e+00 : f32
    %7 = vector.broadcast %cst_6 : f32 to vector<256x128xf32>
    %8 = arith.maximumf %6, %7 : vector<256x128xf32>
    %9 = arith.truncf %8 : vector<256x128xf32> to vector<256x128xbf16>
    %c0_7 = arith.constant 0 : index
    %c0_8 = arith.constant 0 : index
    %10 = vector.load %arg4[%c0_7, %c0_8] : memref<128x144xbf16, #tpu.memory_space<vmem>>, vector<128x144xbf16>
    %cst_9 = arith.constant dense<0.000000e+00> : vector<256x144xf32>
    %11 = tpu.matmul %9, %10, %cst_9 {dimension_numbers = #tpu.dot_dimension_numbers<[1], [0], [0], [1], [0, 0, 1, 1], [], []>} : vector<256x128xbf16>, vector<128x144xbf16>, vector<256x144xf32> -> vector<256x144xf32>
    %cst_10 = arith.constant 0.000000e+00 : f32
    %12 = vector.broadcast %cst_10 : f32 to vector<1x18x18x16xf32>
    %c0_11 = arith.constant 0 : index
    %c0_12 = arith.constant 0 : index
    %c0_13 = arith.constant 0 : index
    %c0_14 = arith.constant 0 : index
    %13 = vector.load %arg5[%c0_11, %c0_12, %c0_13, %c0_14] : memref<1x18x18x16xf32, #tpu.memory_space<vmem>>, vector<1x18x18x16xf32>
    tpu.vector_store %arg5[%c0_11, %c0_12, %c0_13, %c0_14], %12 {strides = array<i32>} : memref<1x18x18x16xf32, #tpu.memory_space<vmem>>, vector<1x18x18x16xf32>,
    %14 = vector.extract_strided_slice %11 {offsets = [0, 0], sizes = [256, 16], strides = [1, 1]} : vector<256x144xf32> to vector<256x16xf32>
    %15 = vector.shape_cast %14 : vector<256x16xf32> to vector<16x16x16xf32>
    %c0_15 = arith.constant 0 : index
    %c2 = arith.constant 2 : index
    %c2_16 = arith.constant 2 : index
    %c0_17 = arith.constant 0 : index
    %16 = vector.load %arg5[%c0_15, %c2, %c2_16, %c0_17] : memref<1x18x18x16xf32, #tpu.memory_space<vmem>>, vector<1x16x16x16xf32>
    %17 = vector.shape_cast %16 : vector<1x16x16x16xf32> to vector<16x16x16xf32>
    %18 = arith.addf %17, %15 : vector<16x16x16xf32>
    %c0_18 = arith.constant 0 : index
    %c2_19 = arith.constant 2 : index
    %c2_20 = arith.constant 2 : index
    %c0_21 = arith.constant 0 : index
    %19 = vector.load %arg5[%c0_18, %c2_19, %c2_20, %c0_21] : memref<1x18x18x16xf32, #tpu.memory_space<vmem>>, vector<1x16x16x16xf32>
    %20 = vector.shape_cast %19 : vector<1x16x16x16xf32> to vector<16x16x16xf32>
    %21 = vector.shape_cast %18 : vector<16x16x16xf32> to vector<1x16x16x16xf32>
    tpu.vector_store %arg5[%c0_18, %c2_19, %c2_20, %c0_21], %21 {strides = array<i32>} : memref<1x18x18x16xf32, #tpu.memory_space<vmem>>, vector<1x16x16x16xf32>,
    %22 = vector.extract_strided_slice %11 {offsets = [0, 16], sizes = [256, 16], strides = [1, 1]} : vector<256x144xf32> to vector<256x16xf32>
    %23 = vector.shape_cast %22 : vector<256x16xf32> to vector<16x16x16xf32>
    %c0_22 = arith.constant 0 : index
    %c2_23 = arith.constant 2 : index
    %c1 = arith.constant 1 : index
    %c0_24 = arith.constant 0 : index
    %24 = vector.load %arg5[%c0_22, %c2_23, %c1, %c0_24] : memref<1x18x18x16xf32, #tpu.memory_space<vmem>>, vector<1x16x16x16xf32>
    %25 = vector.shape_cast %24 : vector<1x16x16x16xf32> to vector<16x16x16xf32>
    %26 = arith.addf %25, %23 : vector<16x16x16xf32>
    %c0_25 = arith.constant 0 : index
    %c2_26 = arith.constant 2 : index
    %c1_27 = arith.constant 1 : index
    %c0_28 = arith.constant 0 : index
    %27 = vector.load %arg5[%c0_25, %c2_26, %c1_27, %c0_28] : memref<1x18x18x16xf32, #tpu.memory_space<vmem>>, vector<1x16x16x16xf32>
    %28 = vector.shape_cast %27 : vector<1x16x16x16xf32> to vector<16x16x16xf32>
    %29 = vector.shape_cast %26 : vector<16x16x16xf32> to vector<1x16x16x16xf32>
    tpu.vector_store %arg5[%c0_25, %c2_26, %c1_27, %c0_28], %29 {strides = array<i32>} : memref<1x18x18x16xf32, #tpu.memory_space<vmem>>, vector<1x16x16x16xf32>,
    %30 = vector.extract_strided_slice %11 {offsets = [0, 32], sizes = [256, 16], strides = [1, 1]} : vector<256x144xf32> to vector<256x16xf32>
    %31 = vector.shape_cast %30 : vector<256x16xf32> to vector<16x16x16xf32>
    %c0_29 = arith.constant 0 : index
    %c2_30 = arith.constant 2 : index
    %c0_31 = arith.constant 0 : index
    %c0_32 = arith.constant 0 : index
    %32 = vector.load %arg5[%c0_29, %c2_30, %c0_31, %c0_32] : memref<1x18x18x16xf32, #tpu.memory_space<vmem>>, vector<1x16x16x16xf32>
    %33 = vector.shape_cast %32 : vector<1x16x16x16xf32> to vector<16x16x16xf32>
    %34 = arith.addf %33, %31 : vector<16x16x16xf32>
    %c0_33 = arith.constant 0 : index
    %c2_34 = arith.constant 2 : index
    %c0_35 = arith.constant 0 : index
    %c0_36 = arith.constant 0 : index
    %35 = vector.load %arg5[%c0_33, %c2_34, %c0_35, %c0_36] : memref<1x18x18x16xf32, #tpu.memory_space<vmem>>, vector<1x16x16x16xf32>
    %36 = vector.shape_cast %35 : vector<1x16x16x16xf32> to vector<16x16x16xf32>
    %37 = vector.shape_cast %34 : vector<16x16x16xf32> to vector<1x16x16x16xf32>
    tpu.vector_store %arg5[%c0_33, %c2_34, %c0_35, %c0_36], %37 {strides = array<i32>} : memref<1x18x18x16xf32, #tpu.memory_space<vmem>>, vector<1x16x16x16xf32>,
    %38 = vector.extract_strided_slice %11 {offsets = [0, 48], sizes = [256, 16], strides = [1, 1]} : vector<256x144xf32> to vector<256x16xf32>
    %39 = vector.shape_cast %38 : vector<256x16xf32> to vector<16x16x16xf32>
    %c0_37 = arith.constant 0 : index
    %c1_38 = arith.constant 1 : index
    %c2_39 = arith.constant 2 : index
    %c0_40 = arith.constant 0 : index
    %40 = vector.load %arg5[%c0_37, %c1_38, %c2_39, %c0_40] : memref<1x18x18x16xf32, #tpu.memory_space<vmem>>, vector<1x16x16x16xf32>
    %41 = vector.shape_cast %40 : vector<1x16x16x16xf32> to vector<16x16x16xf32>
    %42 = arith.addf %41, %39 : vector<16x16x16xf32>
    %c0_41 = arith.constant 0 : index
    %c1_42 = arith.constant 1 : index
    %c2_43 = arith.constant 2 : index
    %c0_44 = arith.constant 0 : index
    %43 = vector.load %arg5[%c0_41, %c1_42, %c2_43, %c0_44] : memref<1x18x18x16xf32, #tpu.memory_space<vmem>>, vector<1x16x16x16xf32>
    %44 = vector.shape_cast %43 : vector<1x16x16x16xf32> to vector<16x16x16xf32>
    %45 = vector.shape_cast %42 : vector<16x16x16xf32> to vector<1x16x16x16xf32>
    tpu.vector_store %arg5[%c0_41, %c1_42, %c2_43, %c0_44], %45 {strides = array<i32>} : memref<1x18x18x16xf32, #tpu.memory_space<vmem>>, vector<1x16x16x16xf32>,
    %46 = vector.extract_strided_slice %11 {offsets = [0, 64], sizes = [256, 16], strides = [1, 1]} : vector<256x144xf32> to vector<256x16xf32>
    %47 = vector.shape_cast %46 : vector<256x16xf32> to vector<16x16x16xf32>
    %c0_45 = arith.constant 0 : index
    %c1_46 = arith.constant 1 : index
    %c1_47 = arith.constant 1 : index
    %c0_48 = arith.constant 0 : index
    %48 = vector.load %arg5[%c0_45, %c1_46, %c1_47, %c0_48] : memref<1x18x18x16xf32, #tpu.memory_space<vmem>>, vector<1x16x16x16xf32>
    %49 = vector.shape_cast %48 : vector<1x16x16x16xf32> to vector<16x16x16xf32>
    %50 = arith.addf %49, %47 : vector<16x16x16xf32>
    %c0_49 = arith.constant 0 : index
    %c1_50 = arith.constant 1 : index
    %c1_51 = arith.constant 1 : index
    %c0_52 = arith.constant 0 : index
    %51 = vector.load %arg5[%c0_49, %c1_50, %c1_51, %c0_52] : memref<1x18x18x16xf32, #tpu.memory_space<vmem>>, vector<1x16x16x16xf32>
    %52 = vector.shape_cast %51 : vector<1x16x16x16xf32> to vector<16x16x16xf32>
    %53 = vector.shape_cast %50 : vector<16x16x16xf32> to vector<1x16x16x16xf32>
    tpu.vector_store %arg5[%c0_49, %c1_50, %c1_51, %c0_52], %53 {strides = array<i32>} : memref<1x18x18x16xf32, #tpu.memory_space<vmem>>, vector<1x16x16x16xf32>,
    %54 = vector.extract_strided_slice %11 {offsets = [0, 80], sizes = [256, 16], strides = [1, 1]} : vector<256x144xf32> to vector<256x16xf32>
    %55 = vector.shape_cast %54 : vector<256x16xf32> to vector<16x16x16xf32>
    %c0_53 = arith.constant 0 : index
    %c1_54 = arith.constant 1 : index
    %c0_55 = arith.constant 0 : index
    %c0_56 = arith.constant 0 : index
    %56 = vector.load %arg5[%c0_53, %c1_54, %c0_55, %c0_56] : memref<1x18x18x16xf32, #tpu.memory_space<vmem>>, vector<1x16x16x16xf32>
    %57 = vector.shape_cast %56 : vector<1x16x16x16xf32> to vector<16x16x16xf32>
    %58 = arith.addf %57, %55 : vector<16x16x16xf32>
    %c0_57 = arith.constant 0 : index
    %c1_58 = arith.constant 1 : index
    %c0_59 = arith.constant 0 : index
    %c0_60 = arith.constant 0 : index
    %59 = vector.load %arg5[%c0_57, %c1_58, %c0_59, %c0_60] : memref<1x18x18x16xf32, #tpu.memory_space<vmem>>, vector<1x16x16x16xf32>
    %60 = vector.shape_cast %59 : vector<1x16x16x16xf32> to vector<16x16x16xf32>
    %61 = vector.shape_cast %58 : vector<16x16x16xf32> to vector<1x16x16x16xf32>
    tpu.vector_store %arg5[%c0_57, %c1_58, %c0_59, %c0_60], %61 {strides = array<i32>} : memref<1x18x18x16xf32, #tpu.memory_space<vmem>>, vector<1x16x16x16xf32>,
    %62 = vector.extract_strided_slice %11 {offsets = [0, 96], sizes = [256, 16], strides = [1, 1]} : vector<256x144xf32> to vector<256x16xf32>
    %63 = vector.shape_cast %62 : vector<256x16xf32> to vector<16x16x16xf32>
    %c0_61 = arith.constant 0 : index
    %c0_62 = arith.constant 0 : index
    %c2_63 = arith.constant 2 : index
    %c0_64 = arith.constant 0 : index
    %64 = vector.load %arg5[%c0_61, %c0_62, %c2_63, %c0_64] : memref<1x18x18x16xf32, #tpu.memory_space<vmem>>, vector<1x16x16x16xf32>
    %65 = vector.shape_cast %64 : vector<1x16x16x16xf32> to vector<16x16x16xf32>
    %66 = arith.addf %65, %63 : vector<16x16x16xf32>
    %c0_65 = arith.constant 0 : index
    %c0_66 = arith.constant 0 : index
    %c2_67 = arith.constant 2 : index
    %c0_68 = arith.constant 0 : index
    %67 = vector.load %arg5[%c0_65, %c0_66, %c2_67, %c0_68] : memref<1x18x18x16xf32, #tpu.memory_space<vmem>>, vector<1x16x16x16xf32>
    %68 = vector.shape_cast %67 : vector<1x16x16x16xf32> to vector<16x16x16xf32>
    %69 = vector.shape_cast %66 : vector<16x16x16xf32> to vector<1x16x16x16xf32>
    tpu.vector_store %arg5[%c0_65, %c0_66, %c2_67, %c0_68], %69 {strides = array<i32>} : memref<1x18x18x16xf32, #tpu.memory_space<vmem>>, vector<1x16x16x16xf32>,
    %70 = vector.extract_strided_slice %11 {offsets = [0, 112], sizes = [256, 16], strides = [1, 1]} : vector<256x144xf32> to vector<256x16xf32>
    %71 = vector.shape_cast %70 : vector<256x16xf32> to vector<16x16x16xf32>
    %c0_69 = arith.constant 0 : index
    %c0_70 = arith.constant 0 : index
    %c1_71 = arith.constant 1 : index
    %c0_72 = arith.constant 0 : index
    %72 = vector.load %arg5[%c0_69, %c0_70, %c1_71, %c0_72] : memref<1x18x18x16xf32, #tpu.memory_space<vmem>>, vector<1x16x16x16xf32>
    %73 = vector.shape_cast %72 : vector<1x16x16x16xf32> to vector<16x16x16xf32>
    %74 = arith.addf %73, %71 : vector<16x16x16xf32>
    %c0_73 = arith.constant 0 : index
    %c0_74 = arith.constant 0 : index
    %c1_75 = arith.constant 1 : index
    %c0_76 = arith.constant 0 : index
    %75 = vector.load %arg5[%c0_73, %c0_74, %c1_75, %c0_76] : memref<1x18x18x16xf32, #tpu.memory_space<vmem>>, vector<1x16x16x16xf32>
    %76 = vector.shape_cast %75 : vector<1x16x16x16xf32> to vector<16x16x16xf32>
    %77 = vector.shape_cast %74 : vector<16x16x16xf32> to vector<1x16x16x16xf32>
    tpu.vector_store %arg5[%c0_73, %c0_74, %c1_75, %c0_76], %77 {strides = array<i32>} : memref<1x18x18x16xf32, #tpu.memory_space<vmem>>, vector<1x16x16x16xf32>,
    %78 = vector.extract_strided_slice %11 {offsets = [0, 128], sizes = [256, 16], strides = [1, 1]} : vector<256x144xf32> to vector<256x16xf32>
    %79 = vector.shape_cast %78 : vector<256x16xf32> to vector<16x16x16xf32>
    %c0_77 = arith.constant 0 : index
    %c0_78 = arith.constant 0 : index
    %c0_79 = arith.constant 0 : index
    %c0_80 = arith.constant 0 : index
    %80 = vector.load %arg5[%c0_77, %c0_78, %c0_79, %c0_80] : memref<1x18x18x16xf32, #tpu.memory_space<vmem>>, vector<1x16x16x16xf32>
    %81 = vector.shape_cast %80 : vector<1x16x16x16xf32> to vector<16x16x16xf32>
    %82 = arith.addf %81, %79 : vector<16x16x16xf32>
    %c0_81 = arith.constant 0 : index
    %c0_82 = arith.constant 0 : index
    %c0_83 = arith.constant 0 : index
    %c0_84 = arith.constant 0 : index
    %83 = vector.load %arg5[%c0_81, %c0_82, %c0_83, %c0_84] : memref<1x18x18x16xf32, #tpu.memory_space<vmem>>, vector<1x16x16x16xf32>
    %84 = vector.shape_cast %83 : vector<1x16x16x16xf32> to vector<16x16x16xf32>
    %85 = vector.shape_cast %82 : vector<16x16x16xf32> to vector<1x16x16x16xf32>
    tpu.vector_store %arg5[%c0_81, %c0_82, %c0_83, %c0_84], %85 {strides = array<i32>} : memref<1x18x18x16xf32, #tpu.memory_space<vmem>>, vector<1x16x16x16xf32>,
    return
  }
  func.func @transform_0(%arg0: i32) -> (i32, i32, i32) {
    %c0_i32 = arith.constant 0 : i32
    %c0_i32_0 = arith.constant 0 : i32
    %c0_i32_1 = arith.constant 0 : i32
    return %arg0, %c0_i32, %c0_i32_0 : i32, i32, i32
  }
  func.func @transform_1(%arg0: i32) -> (i32, i32) {
    %c0_i32 = arith.constant 0 : i32
    %c0_i32_0 = arith.constant 0 : i32
    %c0_i32_1 = arith.constant 0 : i32
    return %c0_i32, %c0_i32_0 : i32, i32
  }
  func.func @transform_2(%arg0: i32) -> (i32, i32) {
    %c0_i32 = arith.constant 0 : i32
    %c0_i32_0 = arith.constant 0 : i32
    %c0_i32_1 = arith.constant 0 : i32
    return %c0_i32, %c0_i32_0 : i32, i32
  }
  func.func @transform_3(%arg0: i32) -> (i32, i32) {
    %c0_i32 = arith.constant 0 : i32
    %c0_i32_0 = arith.constant 0 : i32
    %c0_i32_1 = arith.constant 0 : i32
    return %c0_i32, %c0_i32_0 : i32, i32
  }
  func.func @transform_4(%arg0: i32) -> (i32, i32, i32, i32) {
    %c0_i32 = arith.constant 0 : i32
    %c0_i32_0 = arith.constant 0 : i32
    %c0_i32_1 = arith.constant 0 : i32
    %c0_i32_2 = arith.constant 0 : i32
    return %arg0, %c0_i32, %c0_i32_0, %c0_i32_1 : i32, i32, i32, i32
  }
}

</mosaic_0001>

<llo_original>
// kernel: tpu_custom_call.1
$region0: #{tpu_custom_call.1}
  #allocation0 [shape = 'u32[]', space=smem, size = 0x4, offset = 0x4, fixed_abs, tag = 'smem constant byte address 0x4 - core index']
  #allocation1 [shape = 'u32[144,128]{1,0:T(1,128)}', space=vmem, size = 0x12000, scoped, tag = 'internal scratch']
  %s0 = inlined_call_operand.vmem [shape: f32[2,256,36], index: 0, kind: input, shape index: {}]
  %s1 = inlined_call_operand.vmem [shape: f32[36,128], index: 1, kind: input, shape index: {}]
  %s2 = inlined_call_operand.vmem [shape: f32[1,128], index: 2, kind: input, shape index: {}]
  %s3 = inlined_call_operand.vmem [shape: bf16[128,144], index: 3, kind: input, shape index: {}]
  %s4 = inlined_call_operand.vmem [shape: f32[2,18,18,16], index: 4, kind: output, shape index: {}]
  %s5 = sld [smem:[#allocation0]]
  $region49: #{tpu_custom_call.1} parent=0
    _
  %s7 = ssub.s32 1, %s5
  %s8 = scalar_select 0, %s7, %s5
  loop: start=0, step=1, limit=4
  $region2: #{tpu_custom_call.1} parent=0 // loop_pre_header
    _
  $region3: #{tpu_custom_call.1} parent=0 // loop_header
    %s10 = sphi 0, %s14
    %p11 = scmp.ge.s32.totalorder %s10, 4
    %s20 = sphi 0, %s22
    %s23 = sphi 0, %s20
    %s24 = sphi 0, %s23
    %s40 = sphi 0, %s24
    %s44 = sphi 0, %s44
    %s46 = sphi 0, %s44
    %s47 = sphi 0, %s46
    %s61 = sphi 0, %s47
    %s65 = sphi 0, %s65
    %s67 = sphi 0, %s65
    %s68 = sphi 0, %s67
    %s82 = sphi 0, %s68
    %s86 = sphi 0, %s86
    %s88 = sphi 0, %s86
    %s89 = sphi 0, %s88
    %s103 = sphi 0, %s89
    %s109 = sphi 0, %s111
    %s112 = sphi 0, %s109
    %s113 = sphi 0, %s112
    %s129 = sphi 0, %s113
  $region4: #{tpu_custom_call.1} parent=0 // loop_header_branch
    %13 = sbr.rel (%p11) target = $region8
  $region5: #{tpu_custom_call.1} parent=0 // loop_body
    %s15 = ssub.s32 %s10, 1
    %s16 = ssub.s32 %s10, 2
    %s17 = sadd.s32 %s10, 1
    %s18 = ssub.s32 %s10, %s17
    %p19 = scmp.eq.s32.totalorder %s18, 0
    %s21 = sadd.s32 %s20, 1
    %s22 = scalar_select %p19, %s20, %s21
    %p25 = pneg %p19
    %p26 = scmp.eq.s32.totalorder %s10, 1
    %p27 = por %p25, %p26
    %p28 = scmp.ne.s32.totalorder %s20, %s23
    %p29 = scmp.eq.s32.totalorder %s10, 0
    %p30 = por %p28, %p29
    %p31 = scmp.ne.s32.totalorder %s20, %s23
    %p32 = scmp.eq.s32.totalorder %s15, 1
    %p33 = por %p31, %p32
    %p34 = scmp.ne.s32.totalorder %s23, %s24
    %p35 = scmp.eq.s32.totalorder %s15, 0
    %p36 = por %p34, %p35
    %p37 = scmp.ne.s32.totalorder %s23, %s24
    %p38 = scmp.eq.s32.totalorder %s16, 1
    %p39 = por %p37, %p38
    %p41 = scmp.ne.s32.totalorder %s24, %s40
    %p42 = scmp.eq.s32.totalorder %s16, 0
    %p43 = por %p41, %p42
    %s45 = sadd.s32 %s44, 1
    %p48 = scmp.eq.s32.totalorder %s10, 1
    %p49 = scmp.ne.s32.totalorder %s44, %s46
    %p50 = scmp.eq.s32.totalorder %s10, 0
    %p51 = por %p49, %p50
    %p52 = scmp.ne.s32.totalorder %s44, %s46
    %p53 = scmp.eq.s32.totalorder %s15, 1
    %p54 = por %p52, %p53
    %p55 = scmp.ne.s32.totalorder %s46, %s47
    %p56 = scmp.eq.s32.totalorder %s15, 0
    %p57 = por %p55, %p56
    %p58 = scmp.ne.s32.totalorder %s46, %s47
    %p59 = scmp.eq.s32.totalorder %s16, 1
    %p60 = por %p58, %p59
    %p62 = scmp.ne.s32.totalorder %s47, %s61
    %p63 = scmp.eq.s32.totalorder %s16, 0
    %p64 = por %p62, %p63
    %s66 = sadd.s32 %s65, 1
    %p69 = scmp.eq.s32.totalorder %s10, 1
    %p70 = scmp.ne.s32.totalorder %s65, %s67
    %p71 = scmp.eq.s32.totalorder %s10, 0
    %p72 = por %p70, %p71
    %p73 = scmp.ne.s32.totalorder %s65, %s67
    %p74 = scmp.eq.s32.totalorder %s15, 1
    %p75 = por %p73, %p74
    %p76 = scmp.ne.s32.totalorder %s67, %s68
    %p77 = scmp.eq.s32.totalorder %s15, 0
    %p78 = por %p76, %p77
    %p79 = scmp.ne.s32.totalorder %s67, %s68
    %p80 = scmp.eq.s32.totalorder %s16, 1
    %p81 = por %p79, %p80
    %p83 = scmp.ne.s32.totalorder %s68, %s82
    %p84 = scmp.eq.s32.totalorder %s16, 0
    %p85 = por %p83, %p84
    %s87 = sadd.s32 %s86, 1
    %p90 = scmp.eq.s32.totalorder %s10, 1
    %p91 = scmp.ne.s32.totalorder %s86, %s88
    %p92 = scmp.eq.s32.totalorder %s10, 0
    %p93 = por %p91, %p92
    %p94 = scmp.ne.s32.totalorder %s86, %s88
    %p95 = scmp.eq.s32.totalorder %s15, 1
    %p96 = por %p94, %p95
    %p97 = scmp.ne.s32.totalorder %s88, %s89
    %p98 = scmp.eq.s32.totalorder %s15, 0
    %p99 = por %p97, %p98
    %p100 = scmp.ne.s32.totalorder %s88, %s89
    %p101 = scmp.eq.s32.totalorder %s16, 1
    %p102 = por %p100, %p101
    %p104 = scmp.ne.s32.totalorder %s89, %s103
    %p105 = scmp.eq.s32.totalorder %s16, 0
    %p106 = por %p104, %p105
    %s107 = ssub.s32 %s10, %s17
    %p108 = scmp.eq.s32.totalorder %s107, 0
    %s110 = sadd.s32 %s109, 1
    %s111 = scalar_select %p108, %s109, %s110
    %p114 = pneg %p108
    %p115 = scmp.eq.s32.totalorder %s10, 1
    %p116 = por %p114, %p115
    %p117 = scmp.ne.s32.totalorder %s109, %s112
    %p118 = scmp.eq.s32.totalorder %s10, 0
    %p119 = por %p117, %p118
    %p120 = scmp.ne.s32.totalorder %s109, %s112
    %p121 = scmp.eq.s32.totalorder %s15, 1
    %p122 = por %p120, %p121
    %p123 = scmp.ne.s32.totalorder %s112, %s113
    %p124 = scmp.eq.s32.totalorder %s15, 0
    %p125 = por %p123, %p124
    %p126 = scmp.ne.s32.totalorder %s112, %s113
    %p127 = scmp.eq.s32.totalorder %s16, 1
    %p128 = por %p126, %p127
    %p130 = scmp.ne.s32.totalorder %s113, %s129
    %p131 = scmp.eq.s32.totalorder %s16, 0
    %p132 = por %p130, %p131
    %p133 = scmp.le.s32.totalorder 1, %s10
    %p134 = scmp.lt.s32.totalorder %s10, 3
    %p135 = pnand %p133, %p134
    %p136 = pneg %p135
    // Predicated region
    $region9: #{tpu_custom_call.1} parent=5 // pred_check
      _
    $region10: #{tpu_custom_call.1} parent=5 // pred_check_branch
      %138 = sbr.rel (%p135) target = $region12
    $region11: #{tpu_custom_call.1} parent=5 // pred_region
      %s139 = ssub.s32 %s10, 1
      // Predicated region
      $region13: #{tpu_custom_call.1} parent=11 // pred_check
        %p140 = pneg %p57
      $region14: #{tpu_custom_call.1} parent=11 // pred_check_branch
        %142 = sbr.rel (%p140) target = $region16
      $region15: #{tpu_custom_call.1} parent=11 // pred_region
        _
      $region16: #{tpu_custom_call.1} parent=11 // pred_fallthru
        _
      // Predicated region
      $region17: #{tpu_custom_call.1} parent=11 // pred_check
        %p143 = pneg %p78
      $region18: #{tpu_custom_call.1} parent=11 // pred_check_branch
        %145 = sbr.rel (%p143) target = $region20
      $region19: #{tpu_custom_call.1} parent=11 // pred_region
        _
      $region20: #{tpu_custom_call.1} parent=11 // pred_fallthru
        _
      // Predicated region
      $region21: #{tpu_custom_call.1} parent=11 // pred_check
        %p146 = pneg %p99
      $region22: #{tpu_custom_call.1} parent=11 // pred_check_branch
        %148 = sbr.rel (%p146) target = $region24
      $region23: #{tpu_custom_call.1} parent=11 // pred_region
        _
      $region24: #{tpu_custom_call.1} parent=11 // pred_fallthru
        _
    $region12: #{tpu_custom_call.1} parent=5 // pred_fallthru
      _
    %p149 = scmp.lt.s32.totalorder %s10, 2
    // Predicated region
    $region25: #{tpu_custom_call.1} parent=5 // pred_check
      %p150 = pneg %p149
    $region26: #{tpu_custom_call.1} parent=5 // pred_check_branch
      %152 = sbr.rel (%p150) target = $region28
    $region27: #{tpu_custom_call.1} parent=5 // pred_region
      // Predicated region
      $region29: #{tpu_custom_call.1} parent=27 // pred_check
        %p153 = pneg %p30
      $region30: #{tpu_custom_call.1} parent=27 // pred_check_branch
        %155 = sbr.rel (%p153) target = $region32
      $region31: #{tpu_custom_call.1} parent=27 // pred_region
        %p156 = scmp.lt.s32.totalorder %s10, 1
        %s157 = scalar_select %p156, %s10, 1
        %s158 = smul.addr %s157, 32
        %s159 = smul.addr %s158, 8
        %s160 = scalar_lea.vmem %s0, %s159
      $region32: #{tpu_custom_call.1} parent=27 // pred_fallthru
        _
    $region28: #{tpu_custom_call.1} parent=5 // pred_fallthru
      _
    %p161 = scmp.le.s32.totalorder 1, %s10
    %p162 = scmp.lt.s32.totalorder %s10, 3
    %p163 = pnand %p161, %p162
    %p164 = pneg %p163
    // Predicated region
    $region33: #{tpu_custom_call.1} parent=5 // pred_check
      _
    $region34: #{tpu_custom_call.1} parent=5 // pred_check_branch
      %166 = sbr.rel (%p163) target = $region36
    $region35: #{tpu_custom_call.1} parent=5 // pred_region
      %s167 = ssub.s32 %s10, 1
      %p168 = scmp.lt.s32.totalorder %s15, 1
      %s169 = scalar_select %p168, %s15, 1
      %s170 = smul.addr %s169, 32
      %s171 = smul.addr %s170, 8
      %s172 = scalar_lea.vmem %s0, %s171
      %p173 = pneg %p36
      %p174 = pneg %p33
      %p175 = pneg %p57
      %p176 = pneg %p54
      %p177 = pneg %p78
      %p178 = pneg %p75
      %p179 = pneg %p99
      %p180 = pneg %p96
      %p181 = pneg %p125
      %p182 = pneg %p122
      %p183 = scmp.lt.s32.totalorder %s15, 1
      %s184 = scalar_select %p183, %s15, 1
      %s185 = smul.addr %s184, 54
      %s186 = smul.addr %s185, 8
      %s187 = scalar_lea.vmem %s4, %s186
      %p188 = scmp.lt.s32.totalorder %s15, 1
      %s189 = scalar_select %p188, %s15, 1
      %s190 = smul.addr %s189, 32
      %s191 = smul.addr %s190, 8
      %s192 = scalar_lea.vmem %s0, %s191
      %p193 = scmp.lt.s32.totalorder %s15, 1
      %s194 = scalar_select %p193, %s15, 1
      %s195 = smul.addr %s194, 54
      %s196 = smul.addr %s195, 8
      %s197 = scalar_lea.vmem %s4, %s196
      %v199 = vld [vmem:[%s192] sm:$0xff]
      %v200 = vld [vmem:[%s192 + $0x8] sm:$0xff]
      %v201 = vld [vmem:[%s192 + $0x10] sm:$0xff]
      %v202 = vld [vmem:[%s192 + $0x18] sm:$0xff]
      %v203 = vld [vmem:[%s192 + $0x20] sm:$0xff]
      %v204 = vld [vmem:[%s192 + $0x28] sm:$0xff]
      %v205 = vld [vmem:[%s192 + $0x30] sm:$0xff]
      %v206 = vld [vmem:[%s192 + $0x38] sm:$0xff]
      %v207 = vld [vmem:[%s192 + $0x40] sm:$0xff]
      %v208 = vld [vmem:[%s192 + $0x48] sm:$0xff]
      %v209 = vld [vmem:[%s192 + $0x50] sm:$0xff]
      %v210 = vld [vmem:[%s192 + $0x58] sm:$0xff]
      %v211 = vld [vmem:[%s192 + $0x60] sm:$0xff]
      %v212 = vld [vmem:[%s192 + $0x68] sm:$0xff]
      %v213 = vld [vmem:[%s192 + $0x70] sm:$0xff]
      %v214 = vld [vmem:[%s192 + $0x78] sm:$0xff]
      %v215 = vld [vmem:[%s192 + $0x80] sm:$0xff]
      %v216 = vld [vmem:[%s192 + $0x88] sm:$0xff]
      %v217 = vld [vmem:[%s192 + $0x90] sm:$0xff]
      %v218 = vld [vmem:[%s192 + $0x98] sm:$0xff]
      %v219 = vld [vmem:[%s192 + $0xa0] sm:$0xff]
      %v220 = vld [vmem:[%s192 + $0xa8] sm:$0xff]
      %v221 = vld [vmem:[%s192 + $0xb0] sm:$0xff]
      %v222 = vld [vmem:[%s192 + $0xb8] sm:$0xff]
      %v223 = vld [vmem:[%s192 + $0xc0] sm:$0xff]
      %v224 = vld [vmem:[%s192 + $0xc8] sm:$0xff]
      %v225 = vld [vmem:[%s192 + $0xd0] sm:$0xff]
      %v226 = vld [vmem:[%s192 + $0xd8] sm:$0xff]
      %v227 = vld [vmem:[%s192 + $0xe0] sm:$0xff]
      %v228 = vld [vmem:[%s192 + $0xe8] sm:$0xff]
      %v229 = vld [vmem:[%s192 + $0xf0] sm:$0xff]
      %v230 = vld [vmem:[%s192 + $0xf8] sm:$0xff]
      %v231 = vld [vmem:[%s1] sm:$0xff]
      %v232 = vld [vmem:[%s1 + $0x8] sm:$0xff]
      %v233 = vld [vmem:[%s1 + $0x10] sm:$0xff]
      %v234 = vld [vmem:[%s1 + $0x18] sm:$0xff]
      %v235 = vld [vmem:[%s1 + $0x20] sm:$0xf]
      %v236 = vld [vmem:[%s2] sm:$0x1]
      %v238 = vlaneseq
      %v239 = vshrl.u32 %v238, 7
      %v240 = vsub.s32 0, %v239
      %v241 = vrot.slane %v236, %v240
      %vm243 = vcmask 293888
      %v245 = vsel %vm243, %v199, 0
      %v248 = vsel %vm243, %v200, 0
      %v251 = vsel %vm243, %v201, 0
      %v254 = vsel %vm243, %v202, 0
      %v257 = vsel %vm243, %v203, 0
      %v260 = vsel %vm243, %v204, 0
      %v263 = vsel %vm243, %v205, 0
      %v266 = vsel %vm243, %v206, 0
      %v269 = vsel %vm243, %v207, 0
      %v272 = vsel %vm243, %v208, 0
      %v275 = vsel %vm243, %v209, 0
      %v278 = vsel %vm243, %v210, 0
      %v281 = vsel %vm243, %v211, 0
      %v284 = vsel %vm243, %v212, 0
      %v287 = vsel %vm243, %v213, 0
      %v290 = vsel %vm243, %v214, 0
      %v293 = vsel %vm243, %v215, 0
      %v296 = vsel %vm243, %v216, 0
      %v299 = vsel %vm243, %v217, 0
      %v302 = vsel %vm243, %v218, 0
      %v305 = vsel %vm243, %v219, 0
      %v308 = vsel %vm243, %v220, 0
      %v311 = vsel %vm243, %v221, 0
      %v314 = vsel %vm243, %v222, 0
      %v317 = vsel %vm243, %v223, 0
      %v320 = vsel %vm243, %v224, 0
      %v323 = vsel %vm243, %v225, 0
      %v326 = vsel %vm243, %v226, 0
      %v329 = vsel %vm243, %v227, 0
      %v332 = vsel %vm243, %v228, 0
      %v335 = vsel %vm243, %v229, 0
      %v338 = vsel %vm243, %v230, 0
      %vm340 = vcmask 1043456
      %v342 = vsel %vm340, %v235, 0
      %344 = vmatprep.subr.mxu0 0.0
      %345 = vmatpush1.msra.mxu0 %v231
      %346 = vmatprep.subr.mxu0 0.0
      %347 = vmatpush1.msra.mxu0 %v232
      %348 = vmatprep.subr.mxu0 0.0
      %349 = vmatpush1.msra.mxu0 %v233
      %350 = vmatprep.subr.mxu0 0.0
      %351 = vmatpush1.msra.mxu0 %v234
      %352 = vmatprep.subr.mxu0 0.0
      %353 = vmatpush1.msra.mxu0 %v342
      %354 = vmatprep.subr.mxu0 0.0
      %355 = vmatpush1.msra.mxu0 0.0
      %356 = vmatprep.subr.mxu0 0.0
      %357 = vmatpush1.msra.mxu0 0.0
      %358 = vmatprep.subr.mxu0 0.0
      %359 = vmatpush1.msra.mxu0 0.0
      %360 = vmatprep.subr.mxu0 0.0
      %361 = vmatpush1.msra.mxu0 0.0
      %362 = vmatprep.subr.mxu0 0.0
      %363 = vmatpush1.msra.mxu0 0.0
      %364 = vmatprep.subr.mxu0 0.0
      %365 = vmatpush1.msra.mxu0 0.0
      %366 = vmatprep.subr.mxu0 0.0
      %367 = vmatpush1.msra.mxu0 0.0
      %368 = vmatprep.subr.mxu0 0.0
      %369 = vmatpush1.msra.mxu0 0.0
      %370 = vmatprep.subr.mxu0 0.0
      %371 = vmatpush1.msra.mxu0 0.0
      %372 = vmatprep.subr.mxu0 0.0
      %373 = vmatpush1.msra.mxu0 0.0
      %374 = vmatprep.subr.mxu0 0.0
      %375 = vmatpush1.msra.mxu0 0.0
      %376 = vmatprep.subr.mxu0 0.0
      %377 = vmatpush1.msra.mxu0 0.0
      %378 = vmatprep.subr.mxu0 0.0
      %379 = vmatpush1.msra.mxu0 0.0
      %380 = vmatprep.subr.mxu0 0.0
      %381 = vmatpush1.msra.mxu0 0.0
      %382 = vmatprep.subr.mxu0 0.0
      %383 = vmatpush1.msra.mxu0 0.0
      %384 = vmatprep.subr.mxu0 0.0
      %385 = vmatpush1.msra.mxu0 0.0
      %386 = vmatprep.subr.mxu0 0.0
      %387 = vmatpush1.msra.mxu0 0.0
      %388 = vmatprep.subr.mxu0 0.0
      %389 = vmatpush1.msra.mxu0 0.0
      %390 = vmatprep.subr.mxu0 0.0
      %391 = vmatpush1.msra.mxu0 0.0
      %392 = vmatprep.subr.mxu0 0.0
      %393 = vmatpush1.msra.mxu0 0.0
      %394 = vmatprep.subr.mxu0 0.0
      %395 = vmatpush1.msra.mxu0 0.0
      %396 = vmatprep.subr.mxu0 0.0
      %397 = vmatpush1.msra.mxu0 0.0
      %398 = vmatprep.subr.mxu0 0.0
      %399 = vmatpush1.msra.mxu0 0.0
      %400 = vmatprep.subr.mxu0 0.0
      %401 = vmatpush1.msra.mxu0 0.0
      %402 = vmatprep.subr.mxu0 0.0
      %403 = vmatpush1.msra.mxu0 0.0
      %404 = vmatprep.subr.mxu0 0.0
      %405 = vmatpush1.msra.mxu0 0.0
      %406 = vmatprep.subr.mxu0 0.0
      %407 = vmatpush1.msra.mxu0 0.0
      %408 = vmatprep.mubr.f32.mxu0 0.0
      %409 = vmatmul.mubr.f32.gmra.mrb[0].mxu0 %v245
      %v410 = vpop.f32.mrb[0].mxu0
      %v411 = vadd.f32 %v241, %v410
      %v412 = vpop.f32.mrb[0].mxu0
      %413 = vmatprep.mubr.f32.mxu0 0.0
      %414 = vmatmul.mubr.f32.gmra.mrb[0].mxu0 %v248
      %v415 = vpop.f32.mrb[0].mxu0
      %v416 = vadd.f32 %v241, %v415
      %v417 = vpop.f32.mrb[0].mxu0
      %418 = vmatprep.mubr.f32.mxu0 0.0
      %419 = vmatmul.mubr.f32.gmra.mrb[0].mxu0 %v251
      %v420 = vpop.f32.mrb[0].mxu0
      %v421 = vadd.f32 %v241, %v420
      %v422 = vpop.f32.mrb[0].mxu0
      %423 = vmatprep.mubr.f32.mxu0 0.0
      %424 = vmatmul.mubr.f32.gmra.mrb[0].mxu0 %v254
      %v425 = vpop.f32.mrb[0].mxu0
      %v426 = vadd.f32 %v241, %v425
      %v427 = vpop.f32.mrb[0].mxu0
      %428 = vmatprep.mubr.f32.mxu0 0.0
      %429 = vmatmul.mubr.f32.gmra.mrb[0].mxu0 %v257
      %v430 = vpop.f32.mrb[0].mxu0
      %v431 = vadd.f32 %v241, %v430
      %v432 = vpop.f32.mrb[0].mxu0
      %433 = vmatprep.mubr.f32.mxu0 0.0
      %434 = vmatmul.mubr.f32.gmra.mrb[0].mxu0 %v260
      %v435 = vpop.f32.mrb[0].mxu0
      %v436 = vadd.f32 %v241, %v435
      %v437 = vpop.f32.mrb[0].mxu0
      %438 = vmatprep.mubr.f32.mxu0 0.0
      %439 = vmatmul.mubr.f32.gmra.mrb[0].mxu0 %v263
      %v440 = vpop.f32.mrb[0].mxu0
      %v441 = vadd.f32 %v241, %v440
      %v442 = vpop.f32.mrb[0].mxu0
      %443 = vmatprep.mubr.f32.mxu0 0.0
      %444 = vmatmul.mubr.f32.gmra.mrb[0].mxu0 %v266
      %v445 = vpop.f32.mrb[0].mxu0
      %v446 = vadd.f32 %v241, %v445
      %v447 = vpop.f32.mrb[0].mxu0
      %448 = vmatprep.mubr.f32.mxu0 0.0
      %449 = vmatmul.mubr.f32.gmra.mrb[0].mxu0 %v269
      %v450 = vpop.f32.mrb[0].mxu0
      %v451 = vadd.f32 %v241, %v450
      %v452 = vpop.f32.mrb[0].mxu0
      %453 = vmatprep.mubr.f32.mxu0 0.0
      %454 = vmatmul.mubr.f32.gmra.mrb[0].mxu0 %v272
      %v455 = vpop.f32.mrb[0].mxu0
      %v456 = vadd.f32 %v241, %v455
      %v457 = vpop.f32.mrb[0].mxu0
      %458 = vmatprep.mubr.f32.mxu0 0.0
      %459 = vmatmul.mubr.f32.gmra.mrb[0].mxu0 %v275
      %v460 = vpop.f32.mrb[0].mxu0
      %v461 = vadd.f32 %v241, %v460
      %v462 = vpop.f32.mrb[0].mxu0
      %463 = vmatprep.mubr.f32.mxu0 0.0
      %464 = vmatmul.mubr.f32.gmra.mrb[0].mxu0 %v278
      %v465 = vpop.f32.mrb[0].mxu0
      %v466 = vadd.f32 %v241, %v465
      %v467 = vpop.f32.mrb[0].mxu0
      %468 = vmatprep.mubr.f32.mxu0 0.0
      %469 = vmatmul.mubr.f32.gmra.mrb[0].mxu0 %v281
      %v470 = vpop.f32.mrb[0].mxu0
      %v471 = vadd.f32 %v241, %v470
      %v472 = vpop.f32.mrb[0].mxu0
      %473 = vmatprep.mubr.f32.mxu0 0.0
      %474 = vmatmul.mubr.f32.gmra.mrb[0].mxu0 %v284
      %v475 = vpop.f32.mrb[0].mxu0
      %v476 = vadd.f32 %v241, %v475
      %v477 = vpop.f32.mrb[0].mxu0
      %478 = vmatprep.mubr.f32.mxu0 0.0
      %479 = vmatmul.mubr.f32.gmra.mrb[0].mxu0 %v287
      %v480 = vpop.f32.mrb[0].mxu0
      %v481 = vadd.f32 %v241, %v480
      %v482 = vpop.f32.mrb[0].mxu0
      %483 = vmatprep.mubr.f32.mxu0 0.0
      %484 = vmatmul.mubr.f32.gmra.mrb[0].mxu0 %v290
      %v485 = vpop.f32.mrb[0].mxu0
      %v486 = vadd.f32 %v241, %v485
      %v487 = vpop.f32.mrb[0].mxu0
      %488 = vmatprep.mubr.f32.mxu0 0.0
      %489 = vmatmul.mubr.f32.gmra.mrb[0].mxu0 %v293
      %v490 = vpop.f32.mrb[0].mxu0
      %v491 = vadd.f32 %v241, %v490
      %v492 = vpop.f32.mrb[0].mxu0
      %493 = vmatprep.mubr.f32.mxu0 0.0
      %494 = vmatmul.mubr.f32.gmra.mrb[0].mxu0 %v296
      %v495 = vpop.f32.mrb[0].mxu0
      %v496 = vadd.f32 %v241, %v495
      %v497 = vpop.f32.mrb[0].mxu0
      %498 = vmatprep.mubr.f32.mxu0 0.0
      %499 = vmatmul.mubr.f32.gmra.mrb[0].mxu0 %v299
      %v500 = vpop.f32.mrb[0].mxu0
      %v501 = vadd.f32 %v241, %v500
      %v502 = vpop.f32.mrb[0].mxu0
      %503 = vmatprep.mubr.f32.mxu0 0.0
      %504 = vmatmul.mubr.f32.gmra.mrb[0].mxu0 %v302
      %v505 = vpop.f32.mrb[0].mxu0
      %v506 = vadd.f32 %v241, %v505
      %v507 = vpop.f32.mrb[0].mxu0
      %508 = vmatprep.mubr.f32.mxu0 0.0
      %509 = vmatmul.mubr.f32.gmra.mrb[0].mxu0 %v305
      %v510 = vpop.f32.mrb[0].mxu0
      %v511 = vadd.f32 %v241, %v510
      %v512 = vpop.f32.mrb[0].mxu0
      %513 = vmatprep.mubr.f32.mxu0 0.0
      %514 = vmatmul.mubr.f32.gmra.mrb[0].mxu0 %v308
      %v515 = vpop.f32.mrb[0].mxu0
      %v516 = vadd.f32 %v241, %v515
      %v517 = vpop.f32.mrb[0].mxu0
      %518 = vmatprep.mubr.f32.mxu0 0.0
      %519 = vmatmul.mubr.f32.gmra.mrb[0].mxu0 %v311
      %v520 = vpop.f32.mrb[0].mxu0
      %v521 = vadd.f32 %v241, %v520
      %v522 = vpop.f32.mrb[0].mxu0
      %523 = vmatprep.mubr.f32.mxu0 0.0
      %524 = vmatmul.mubr.f32.gmra.mrb[0].mxu0 %v314
      %v525 = vpop.f32.mrb[0].mxu0
      %v526 = vadd.f32 %v241, %v525
      %v527 = vpop.f32.mrb[0].mxu0
      %528 = vmatprep.mubr.f32.mxu0 0.0
      %529 = vmatmul.mubr.f32.gmra.mrb[0].mxu0 %v317
      %v530 = vpop.f32.mrb[0].mxu0
      %v531 = vadd.f32 %v241, %v530
      %v532 = vpop.f32.mrb[0].mxu0
      %533 = vmatprep.mubr.f32.mxu0 0.0
      %534 = vmatmul.mubr.f32.gmra.mrb[0].mxu0 %v320
      %v535 = vpop.f32.mrb[0].mxu0
      %v536 = vadd.f32 %v241, %v535
      %v537 = vpop.f32.mrb[0].mxu0
      %538 = vmatprep.mubr.f32.mxu0 0.0
      %539 = vmatmul.mubr.f32.gmra.mrb[0].mxu0 %v323
      %v540 = vpop.f32.mrb[0].mxu0
      %v541 = vadd.f32 %v241, %v540
      %v542 = vpop.f32.mrb[0].mxu0
      %543 = vmatprep.mubr.f32.mxu0 0.0
      %544 = vmatmul.mubr.f32.gmra.mrb[0].mxu0 %v326
      %v545 = vpop.f32.mrb[0].mxu0
      %v546 = vadd.f32 %v241, %v545
      %v547 = vpop.f32.mrb[0].mxu0
      %548 = vmatprep.mubr.f32.mxu0 0.0
      %549 = vmatmul.mubr.f32.gmra.mrb[0].mxu0 %v329
      %v550 = vpop.f32.mrb[0].mxu0
      %v551 = vadd.f32 %v241, %v550
      %v552 = vpop.f32.mrb[0].mxu0
      %553 = vmatprep.mubr.f32.mxu0 0.0
      %554 = vmatmul.mubr.f32.gmra.mrb[0].mxu0 %v332
      %v555 = vpop.f32.mrb[0].mxu0
      %v556 = vadd.f32 %v241, %v555
      %v557 = vpop.f32.mrb[0].mxu0
      %558 = vmatprep.mubr.f32.mxu0 0.0
      %559 = vmatmul.mubr.f32.gmra.mrb[0].mxu0 %v335
      %v560 = vpop.f32.mrb[0].mxu0
      %v561 = vadd.f32 %v241, %v560
      %v562 = vpop.f32.mrb[0].mxu0
      %563 = vmatprep.mubr.f32.mxu0 0.0
      %564 = vmatmul.mubr.f32.gmra.mrb[0].mxu0 %v338
      %v565 = vpop.f32.mrb[0].mxu0
      %v566 = vadd.f32 %v241, %v565
      %v567 = vpop.f32.mrb[0].mxu0
      %568 = vdwg.mxu0
      %v569 = vmax.f32 %v411, 0.0
      %v570 = vmax.f32 %v416, 0.0
      %v571 = vmax.f32 %v421, 0.0
      %v572 = vmax.f32 %v426, 0.0
      %v573 = vmax.f32 %v431, 0.0
      %v574 = vmax.f32 %v436, 0.0
      %v575 = vmax.f32 %v441, 0.0
      %v576 = vmax.f32 %v446, 0.0
      %v577 = vmax.f32 %v451, 0.0
      %v578 = vmax.f32 %v456, 0.0
      %v579 = vmax.f32 %v461, 0.0
      %v580 = vmax.f32 %v466, 0.0
      %v581 = vmax.f32 %v471, 0.0
      %v582 = vmax.f32 %v476, 0.0
      %v583 = vmax.f32 %v481, 0.0
      %v584 = vmax.f32 %v486, 0.0
      %v585 = vmax.f32 %v491, 0.0
      %v586 = vmax.f32 %v496, 0.0
      %v587 = vmax.f32 %v501, 0.0
      %v588 = vmax.f32 %v506, 0.0
      %v589 = vmax.f32 %v511, 0.0
      %v590 = vmax.f32 %v516, 0.0
      %v591 = vmax.f32 %v521, 0.0
      %v592 = vmax.f32 %v526, 0.0
      %v593 = vmax.f32 %v531, 0.0
      %v594 = vmax.f32 %v536, 0.0
      %v595 = vmax.f32 %v541, 0.0
      %v596 = vmax.f32 %v546, 0.0
      %v597 = vmax.f32 %v551, 0.0
      %v598 = vmax.f32 %v556, 0.0
      %v599 = vmax.f32 %v561, 0.0
      %v600 = vmax.f32 %v566, 0.0
      %v601 = vpack.c.bf16 %v570, %v569
      %v602 = vpack.c.bf16 %v572, %v571
      %v603 = vpack.c.bf16 %v574, %v573
      %v604 = vpack.c.bf16 %v576, %v575
      %v605 = vpack.c.bf16 %v578, %v577
      %v606 = vpack.c.bf16 %v580, %v579
      %v607 = vpack.c.bf16 %v582, %v581
      %v608 = vpack.c.bf16 %v584, %v583
      %v609 = vpack.c.bf16 %v586, %v585
      %v610 = vpack.c.bf16 %v588, %v587
      %v611 = vpack.c.bf16 %v590, %v589
      %v612 = vpack.c.bf16 %v592, %v591
      %v613 = vpack.c.bf16 %v594, %v593
      %v614 = vpack.c.bf16 %v596, %v595
      %v615 = vpack.c.bf16 %v598, %v597
      %v616 = vpack.c.bf16 %v600, %v599
      %v617 = vld [vmem:[%s3] sm:$0xff]
      %v618 = vld [vmem:[%s3 + $0x8] sm:$0xff]
      %v619 = vld [vmem:[%s3 + $0x10] sm:$0xff]
      %v620 = vld [vmem:[%s3 + $0x18] sm:$0xff]
      %v621 = vld [vmem:[%s3 + $0x20] sm:$0xff]
      %v622 = vld [vmem:[%s3 + $0x28] sm:$0xff]
      %v623 = vld [vmem:[%s3 + $0x30] sm:$0xff]
      %v624 = vld [vmem:[%s3 + $0x38] sm:$0xff]
      %v625 = vld [vmem:[%s3 + $0x40] sm:$0xff]
      %v626 = vld [vmem:[%s3 + $0x48] sm:$0xff]
      %v627 = vld [vmem:[%s3 + $0x50] sm:$0xff]
      %v628 = vld [vmem:[%s3 + $0x58] sm:$0xff]
      %v629 = vld [vmem:[%s3 + $0x60] sm:$0xff]
      %v630 = vld [vmem:[%s3 + $0x68] sm:$0xff]
      %v631 = vld [vmem:[%s3 + $0x70] sm:$0xff]
      %v632 = vld [vmem:[%s3 + $0x78] sm:$0xff]
      %v649 = vunpack.c.l.b16 %v617
      %v650 = vunpack.c.h.b16 %v617
      %v651 = vunpack.c.l.b16 %v618
      %v652 = vunpack.c.h.b16 %v618
      %v653 = vunpack.c.l.b16 %v619
      %v654 = vunpack.c.h.b16 %v619
      %v655 = vunpack.c.l.b16 %v620
      %v656 = vunpack.c.h.b16 %v620
      %v657 = vunpack.c.l.b16 %v621
      %v658 = vunpack.c.h.b16 %v621
      %v659 = vunpack.c.l.b16 %v622
      %v660 = vunpack.c.h.b16 %v622
      %v661 = vunpack.c.l.b16 %v623
      %v662 = vunpack.c.h.b16 %v623
      %v663 = vunpack.c.l.b16 %v624
      %v664 = vunpack.c.h.b16 %v624
      %v665 = vunpack.c.l.b16 %v625
      %v666 = vunpack.c.h.b16 %v625
      %v667 = vunpack.c.l.b16 %v626
      %v668 = vunpack.c.h.b16 %v626
      %v669 = vunpack.c.l.b16 %v627
      %v670 = vunpack.c.h.b16 %v627
      %v671 = vunpack.c.l.b16 %v628
      %v672 = vunpack.c.h.b16 %v628
      %v673 = vunpack.c.l.b16 %v629
      %v674 = vunpack.c.h.b16 %v629
      %v675 = vunpack.c.l.b16 %v630
      %v676 = vunpack.c.h.b16 %v630
      %v677 = vunpack.c.l.b16 %v631
      %v678 = vunpack.c.h.b16 %v631
      %v679 = vunpack.c.l.b16 %v632
      %v680 = vunpack.c.h.b16 %v632
      %v681 = vpack.c.b16 %v651, %v649
      %v682 = vpack.c.b16 %v652, %v650
      %v683 = vpack.c.b16 %v655, %v653
      %v684 = vpack.c.b16 %v656, %v654
      %v685 = vpack.c.b16 %v659, %v657
      %v686 = vpack.c.b16 %v660, %v658
      %v687 = vpack.c.b16 %v663, %v661
      %v688 = vpack.c.b16 %v664, %v662
      %v689 = vpack.c.b16 %v667, %v665
      %v690 = vpack.c.b16 %v668, %v666
      %v691 = vpack.c.b16 %v671, %v669
      %v692 = vpack.c.b16 %v672, %v670
      %v693 = vpack.c.b16 %v675, %v673
      %v694 = vpack.c.b16 %v676, %v674
      %v695 = vpack.c.b16 %v679, %v677
      %v696 = vpack.c.b16 %v680, %v678
      %713 = vmatprep.subr.bf16.mxu0 %v682
      %714 = vmatpush1.bf16.msra.mxu0 %v681
      %715 = vmatprep.subr.bf16.mxu0 %v684
      %716 = vmatpush1.bf16.msra.mxu0 %v683
      %717 = vmatprep.subr.bf16.mxu0 %v686
      %718 = vmatpush1.bf16.msra.mxu0 %v685
      %719 = vmatprep.subr.bf16.mxu0 %v688
      %720 = vmatpush1.bf16.msra.mxu0 %v687
      %721 = vmatprep.subr.bf16.mxu0 %v690
      %722 = vmatpush1.bf16.msra.mxu0 %v689
      %723 = vmatprep.subr.bf16.mxu0 %v692
      %724 = vmatpush1.bf16.msra.mxu0 %v691
      %725 = vmatprep.subr.bf16.mxu0 %v694
      %726 = vmatpush1.bf16.msra.mxu0 %v693
      %727 = vmatprep.subr.bf16.mxu0 %v696
      %728 = vmatpush1.bf16.msra.mxu0 %v695
      %729 = vmatprep.subr.bf16.mxu0 0
      %730 = vmatpush1.bf16.msra.mxu0 0
      %731 = vmatprep.subr.bf16.mxu0 0
      %732 = vmatpush1.bf16.msra.mxu0 0
      %733 = vmatprep.subr.bf16.mxu0 0
      %734 = vmatpush1.bf16.msra.mxu0 0
      %735 = vmatprep.subr.bf16.mxu0 0
      %736 = vmatpush1.bf16.msra.mxu0 0
      %737 = vmatprep.subr.bf16.mxu0 0
      %738 = vmatpush1.bf16.msra.mxu0 0
      %739 = vmatprep.subr.bf16.mxu0 0
      %740 = vmatpush1.bf16.msra.mxu0 0
      %741 = vmatprep.subr.bf16.mxu0 0
      %742 = vmatpush1.bf16.msra.mxu0 0
      %743 = vmatprep.subr.bf16.mxu0 0
      %744 = vmatpush1.bf16.msra.mxu0 0
      %745 = vmatprep.mubr.bf16.mxu0 0
      %746 = vmatmul.mubr.bf16.gmra.mrb[0].mxu0 %v601
      %v747 = vpop.f32.mrb[0].mxu0
      %v748 = vadd.f32 0.0, %v747
      %v749 = vpop.f32.mrb[0].mxu0
      %v750 = vadd.f32 0.0, %v749
      %v751 = vpop.f32.mrb[0].mxu0
      %v752 = vadd.f32 0.0, %v751
      %v753 = vpop.f32.mrb[0].mxu0
      %v754 = vadd.f32 0.0, %v753
      %755 = vmatprep.mubr.bf16.mxu0 0
      %756 = vmatmul.mubr.bf16.gmra.mrb[0].mxu0 %v602
      %v757 = vpop.f32.mrb[0].mxu0
      %v758 = vadd.f32 0.0, %v757
      %v759 = vpop.f32.mrb[0].mxu0
      %v760 = vadd.f32 0.0, %v759
      %v761 = vpop.f32.mrb[0].mxu0
      %v762 = vadd.f32 0.0, %v761
      %v763 = vpop.f32.mrb[0].mxu0
      %v764 = vadd.f32 0.0, %v763
      %765 = vmatprep.mubr.bf16.mxu0 0
      %766 = vmatmul.mubr.bf16.gmra.mrb[0].mxu0 %v603
      %v767 = vpop.f32.mrb[0].mxu0
      %v768 = vadd.f32 0.0, %v767
      %v769 = vpop.f32.mrb[0].mxu0
      %v770 = vadd.f32 0.0, %v769
      %v771 = vpop.f32.mrb[0].mxu0
      %v772 = vadd.f32 0.0, %v771
      %v773 = vpop.f32.mrb[0].mxu0
      %v774 = vadd.f32 0.0, %v773
      %775 = vmatprep.mubr.bf16.mxu0 0
      %776 = vmatmul.mubr.bf16.gmra.mrb[0].mxu0 %v604
      %v777 = vpop.f32.mrb[0].mxu0
      %v778 = vadd.f32 0.0, %v777
      %v779 = vpop.f32.mrb[0].mxu0
      %v780 = vadd.f32 0.0, %v779
      %v781 = vpop.f32.mrb[0].mxu0
      %v782 = vadd.f32 0.0, %v781
      %v783 = vpop.f32.mrb[0].mxu0
      %v784 = vadd.f32 0.0, %v783
      %785 = vmatprep.mubr.bf16.mxu0 0
      %786 = vmatmul.mubr.bf16.gmra.mrb[0].mxu0 %v605
      %v787 = vpop.f32.mrb[0].mxu0
      %v788 = vadd.f32 0.0, %v787
      %v789 = vpop.f32.mrb[0].mxu0
      %v790 = vadd.f32 0.0, %v789
      %v791 = vpop.f32.mrb[0].mxu0
      %v792 = vadd.f32 0.0, %v791
      %v793 = vpop.f32.mrb[0].mxu0
      %v794 = vadd.f32 0.0, %v793
      %795 = vmatprep.mubr.bf16.mxu0 0
      %796 = vmatmul.mubr.bf16.gmra.mrb[0].mxu0 %v606
      %v797 = vpop.f32.mrb[0].mxu0
      %v798 = vadd.f32 0.0, %v797
      %v799 = vpop.f32.mrb[0].mxu0
      %v800 = vadd.f32 0.0, %v799
      %v801 = vpop.f32.mrb[0].mxu0
      %v802 = vadd.f32 0.0, %v801
      %v803 = vpop.f32.mrb[0].mxu0
      %v804 = vadd.f32 0.0, %v803
      %805 = vmatprep.mubr.bf16.mxu0 0
      %806 = vmatmul.mubr.bf16.gmra.mrb[0].mxu0 %v607
      %v807 = vpop.f32.mrb[0].mxu0
      %v808 = vadd.f32 0.0, %v807
      %v809 = vpop.f32.mrb[0].mxu0
      %v810 = vadd.f32 0.0, %v809
      %v811 = vpop.f32.mrb[0].mxu0
      %v812 = vadd.f32 0.0, %v811
      %v813 = vpop.f32.mrb[0].mxu0
      %v814 = vadd.f32 0.0, %v813
      %815 = vmatprep.mubr.bf16.mxu0 0
      %816 = vmatmul.mubr.bf16.gmra.mrb[0].mxu0 %v608
      %v817 = vpop.f32.mrb[0].mxu0
      %v818 = vadd.f32 0.0, %v817
      %v819 = vpop.f32.mrb[0].mxu0
      %v820 = vadd.f32 0.0, %v819
      %v821 = vpop.f32.mrb[0].mxu0
      %v822 = vadd.f32 0.0, %v821
      %v823 = vpop.f32.mrb[0].mxu0
      %v824 = vadd.f32 0.0, %v823
      %825 = vmatprep.mubr.bf16.mxu0 0
      %826 = vmatmul.mubr.bf16.gmra.mrb[0].mxu0 %v609
      %v827 = vpop.f32.mrb[0].mxu0
      %v828 = vadd.f32 0.0, %v827
      %v829 = vpop.f32.mrb[0].mxu0
      %v830 = vadd.f32 0.0, %v829
      %v831 = vpop.f32.mrb[0].mxu0
      %v832 = vadd.f32 0.0, %v831
      %v833 = vpop.f32.mrb[0].mxu0
      %v834 = vadd.f32 0.0, %v833
      %835 = vmatprep.mubr.bf16.mxu0 0
      %836 = vmatmul.mubr.bf16.gmra.mrb[0].mxu0 %v610
      %v837 = vpop.f32.mrb[0].mxu0
      %v838 = vadd.f32 0.0, %v837
      %v839 = vpop.f32.mrb[0].mxu0
      %v840 = vadd.f32 0.0, %v839
      %v841 = vpop.f32.mrb[0].mxu0
      %v842 = vadd.f32 0.0, %v841
      %v843 = vpop.f32.mrb[0].mxu0
      %v844 = vadd.f32 0.0, %v843
      %845 = vmatprep.mubr.bf16.mxu0 0
      %846 = vmatmul.mubr.bf16.gmra.mrb[0].mxu0 %v611
      %v847 = vpop.f32.mrb[0].mxu0
      %v848 = vadd.f32 0.0, %v847
      %v849 = vpop.f32.mrb[0].mxu0
      %v850 = vadd.f32 0.0, %v849
      %v851 = vpop.f32.mrb[0].mxu0
      %v852 = vadd.f32 0.0, %v851
      %v853 = vpop.f32.mrb[0].mxu0
      %v854 = vadd.f32 0.0, %v853
      %855 = vmatprep.mubr.bf16.mxu0 0
      %856 = vmatmul.mubr.bf16.gmra.mrb[0].mxu0 %v612
      %v857 = vpop.f32.mrb[0].mxu0
      %v858 = vadd.f32 0.0, %v857
      %v859 = vpop.f32.mrb[0].mxu0
      %v860 = vadd.f32 0.0, %v859
      %v861 = vpop.f32.mrb[0].mxu0
      %v862 = vadd.f32 0.0, %v861
      %v863 = vpop.f32.mrb[0].mxu0
      %v864 = vadd.f32 0.0, %v863
      %865 = vmatprep.mubr.bf16.mxu0 0
      %866 = vmatmul.mubr.bf16.gmra.mrb[0].mxu0 %v613
      %v867 = vpop.f32.mrb[0].mxu0
      %v868 = vadd.f32 0.0, %v867
      %v869 = vpop.f32.mrb[0].mxu0
      %v870 = vadd.f32 0.0, %v869
      %v871 = vpop.f32.mrb[0].mxu0
      %v872 = vadd.f32 0.0, %v871
      %v873 = vpop.f32.mrb[0].mxu0
      %v874 = vadd.f32 0.0, %v873
      %875 = vmatprep.mubr.bf16.mxu0 0
      %876 = vmatmul.mubr.bf16.gmra.mrb[0].mxu0 %v614
      %v877 = vpop.f32.mrb[0].mxu0
      %v878 = vadd.f32 0.0, %v877
      %v879 = vpop.f32.mrb[0].mxu0
      %v880 = vadd.f32 0.0, %v879
      %v881 = vpop.f32.mrb[0].mxu0
      %v882 = vadd.f32 0.0, %v881
      %v883 = vpop.f32.mrb[0].mxu0
      %v884 = vadd.f32 0.0, %v883
      %885 = vmatprep.mubr.bf16.mxu0 0
      %886 = vmatmul.mubr.bf16.gmra.mrb[0].mxu0 %v615
      %v887 = vpop.f32.mrb[0].mxu0
      %v888 = vadd.f32 0.0, %v887
      %v889 = vpop.f32.mrb[0].mxu0
      %v890 = vadd.f32 0.0, %v889
      %v891 = vpop.f32.mrb[0].mxu0
      %v892 = vadd.f32 0.0, %v891
      %v893 = vpop.f32.mrb[0].mxu0
      %v894 = vadd.f32 0.0, %v893
      %895 = vmatprep.mubr.bf16.mxu0 0
      %896 = vmatmul.mubr.bf16.gmra.mrb[0].mxu0 %v616
      %v897 = vpop.f32.mrb[0].mxu0
      %v898 = vadd.f32 0.0, %v897
      %v899 = vpop.f32.mrb[0].mxu0
      %v900 = vadd.f32 0.0, %v899
      %v901 = vpop.f32.mrb[0].mxu0
      %v902 = vadd.f32 0.0, %v901
      %v903 = vpop.f32.mrb[0].mxu0
      %v904 = vadd.f32 0.0, %v903
      %905 = vdwg.mxu0
      %vm906 = vcmask 130048
      %907 = vst.msk [vmem:[%s197] sm:$0xff] %vm906, 0.0
      %908 = vst.msk [vmem:[%s197 + $0x8] sm:$0xff] %vm906, 0.0
      %vm909 = vcmask 123904
      %910 = vst.msk [vmem:[%s197 + $0x10] sm:$0x3] %vm909, 0.0
      %911 = vst.msk [vmem:[%s197 + $0x18] sm:$0xff] %vm906, 0.0
      %912 = vst.msk [vmem:[%s197 + $0x20] sm:$0xff] %vm906, 0.0
      %913 = vst.msk [vmem:[%s197 + $0x28] sm:$0x3] %vm909, 0.0
      %914 = vst.msk [vmem:[%s197 + $0x30] sm:$0xff] %vm906, 0.0
      %915 = vst.msk [vmem:[%s197 + $0x38] sm:$0xff] %vm906, 0.0
      %916 = vst.msk [vmem:[%s197 + $0x40] sm:$0x3] %vm909, 0.0
      %917 = vst.msk [vmem:[%s197 + $0x48] sm:$0xff] %vm906, 0.0
      %918 = vst.msk [vmem:[%s197 + $0x50] sm:$0xff] %vm906, 0.0
      %919 = vst.msk [vmem:[%s197 + $0x58] sm:$0x3] %vm909, 0.0
      %920 = vst.msk [vmem:[%s197 + $0x60] sm:$0xff] %vm906, 0.0
      %921 = vst.msk [vmem:[%s197 + $0x68] sm:$0xff] %vm906, 0.0
      %922 = vst.msk [vmem:[%s197 + $0x70] sm:$0x3] %vm909, 0.0
      %923 = vst.msk [vmem:[%s197 + $0x78] sm:$0xff] %vm906, 0.0
      %924 = vst.msk [vmem:[%s197 + $0x80] sm:$0xff] %vm906, 0.0
      %925 = vst.msk [vmem:[%s197 + $0x88] sm:$0x3] %vm909, 0.0
      %926 = vst.msk [vmem:[%s197 + $0x90] sm:$0xff] %vm906, 0.0
      %927 = vst.msk [vmem:[%s197 + $0x98] sm:$0xff] %vm906, 0.0
      %928 = vst.msk [vmem:[%s197 + $0xa0] sm:$0x3] %vm909, 0.0
      %929 = vst.msk [vmem:[%s197 + $0xa8] sm:$0xff] %vm906, 0.0
      %930 = vst.msk [vmem:[%s197 + $0xb0] sm:$0xff] %vm906, 0.0
      %931 = vst.msk [vmem:[%s197 + $0xb8] sm:$0x3] %vm909, 0.0
      %932 = vst.msk [vmem:[%s197 + $0xc0] sm:$0xff] %vm906, 0.0
      %933 = vst.msk [vmem:[%s197 + $0xc8] sm:$0xff] %vm906, 0.0
      %934 = vst.msk [vmem:[%s197 + $0xd0] sm:$0x3] %vm909, 0.0
      %935 = vst.msk [vmem:[%s197 + $0xd8] sm:$0xff] %vm906, 0.0
      %936 = vst.msk [vmem:[%s197 + $0xe0] sm:$0xff] %vm906, 0.0
      %937 = vst.msk [vmem:[%s197 + $0xe8] sm:$0x3] %vm909, 0.0
      %938 = vst.msk [vmem:[%s197 + $0xf0] sm:$0xff] %vm906, 0.0
      %939 = vst.msk [vmem:[%s197 + $0xf8] sm:$0xff] %vm906, 0.0
      %940 = vst.msk [vmem:[%s197 + $0x100] sm:$0x3] %vm909, 0.0
      %941 = vst.msk [vmem:[%s197 + $0x108] sm:$0xff] %vm906, 0.0
      %942 = vst.msk [vmem:[%s197 + $0x110] sm:$0xff] %vm906, 0.0
      %943 = vst.msk [vmem:[%s197 + $0x118] sm:$0x3] %vm909, 0.0
      %944 = vst.msk [vmem:[%s197 + $0x120] sm:$0xff] %vm906, 0.0
      %945 = vst.msk [vmem:[%s197 + $0x128] sm:$0xff] %vm906, 0.0
      %946 = vst.msk [vmem:[%s197 + $0x130] sm:$0x3] %vm909, 0.0
      %947 = vst.msk [vmem:[%s197 + $0x138] sm:$0xff] %vm906, 0.0
      %948 = vst.msk [vmem:[%s197 + $0x140] sm:$0xff] %vm906, 0.0
      %949 = vst.msk [vmem:[%s197 + $0x148] sm:$0x3] %vm909, 0.0
      %950 = vst.msk [vmem:[%s197 + $0x150] sm:$0xff] %vm906, 0.0
      %951 = vst.msk [vmem:[%s197 + $0x158] sm:$0xff] %vm906, 0.0
      %952 = vst.msk [vmem:[%s197 + $0x160] sm:$0x3] %vm909, 0.0
      %953 = vst.msk [vmem:[%s197 + $0x168] sm:$0xff] %vm906, 0.0
      %954 = vst.msk [vmem:[%s197 + $0x170] sm:$0xff] %vm906, 0.0
      %955 = vst.msk [vmem:[%s197 + $0x178] sm:$0x3] %vm909, 0.0
      %956 = vst.msk [vmem:[%s197 + $0x180] sm:$0xff] %vm906, 0.0
      %957 = vst.msk [vmem:[%s197 + $0x188] sm:$0xff] %vm906, 0.0
      %958 = vst.msk [vmem:[%s197 + $0x190] sm:$0x3] %vm909, 0.0
      %959 = vst.msk [vmem:[%s197 + $0x198] sm:$0xff] %vm906, 0.0
      %960 = vst.msk [vmem:[%s197 + $0x1a0] sm:$0xff] %vm906, 0.0
      %961 = vst.msk [vmem:[%s197 + $0x1a8] sm:$0x3] %vm909, 0.0
      %s962 = scalar_lea.vmem %s197, 48
      %v963 = vld [vmem:[%s962 + $0x2] sm:$0xff]
      %v964 = vld [vmem:[%s962 + $0xa] sm:$0xff]
      %v965 = vld [vmem:[%s962 + $0x1a] sm:$0xff]
      %v966 = vld [vmem:[%s962 + $0x22] sm:$0xff]
      %v967 = vld [vmem:[%s962 + $0x32] sm:$0xff]
      %v968 = vld [vmem:[%s962 + $0x3a] sm:$0xff]
      %v969 = vld [vmem:[%s962 + $0x4a] sm:$0xff]
      %v970 = vld [vmem:[%s962 + $0x52] sm:$0xff]
      %v971 = vld [vmem:[%s962 + $0x62] sm:$0xff]
      %v972 = vld [vmem:[%s962 + $0x6a] sm:$0xff]
      %v973 = vld [vmem:[%s962 + $0x7a] sm:$0xff]
      %v974 = vld [vmem:[%s962 + $0x82] sm:$0xff]
      %v975 = vld [vmem:[%s962 + $0x92] sm:$0xff]
      %v976 = vld [vmem:[%s962 + $0x9a] sm:$0xff]
      %v977 = vld [vmem:[%s962 + $0xaa] sm:$0xff]
      %v978 = vld [vmem:[%s962 + $0xb2] sm:$0xff]
      %v979 = vld [vmem:[%s962 + $0xc2] sm:$0xff]
      %v980 = vld [vmem:[%s962 + $0xca] sm:$0xff]
      %v981 = vld [vmem:[%s962 + $0xda] sm:$0xff]
      %v982 = vld [vmem:[%s962 + $0xe2] sm:$0xff]
      %v983 = vld [vmem:[%s962 + $0xf2] sm:$0xff]
      %v984 = vld [vmem:[%s962 + $0xfa] sm:$0xff]
      %v985 = vld [vmem:[%s962 + $0x10a] sm:$0xff]
      %v986 = vld [vmem:[%s962 + $0x112] sm:$0xff]
      %v987 = vld [vmem:[%s962 + $0x122] sm:$0xff]
      %v988 = vld [vmem:[%s962 + $0x12a] sm:$0xff]
      %v989 = vld [vmem:[%s962 + $0x13a] sm:$0xff]
      %v990 = vld [vmem:[%s962 + $0x142] sm:$0xff]
      %v991 = vld [vmem:[%s962 + $0x152] sm:$0xff]
      %v992 = vld [vmem:[%s962 + $0x15a] sm:$0xff]
      %v993 = vld [vmem:[%s962 + $0x16a] sm:$0xff]
      %v994 = vld [vmem:[%s962 + $0x172] sm:$0xff]
      %v995 = vadd.f32 %v963, %v748
      %v996 = vadd.f32 %v964, %v752
      %v997 = vadd.f32 %v965, %v758
      %v998 = vadd.f32 %v966, %v762
      %v999 = vadd.f32 %v967, %v768
      %v1000 = vadd.f32 %v968, %v772
      %v1001 = vadd.f32 %v969, %v778
      %v1002 = vadd.f32 %v970, %v782
      %v1003 = vadd.f32 %v971, %v788
      %v1004 = vadd.f32 %v972, %v792
      %v1005 = vadd.f32 %v973, %v798
      %v1006 = vadd.f32 %v974, %v802
      %v1007 = vadd.f32 %v975, %v808
      %v1008 = vadd.f32 %v976, %v812
      %v1009 = vadd.f32 %v977, %v818
      %v1010 = vadd.f32 %v978, %v822
      %v1011 = vadd.f32 %v979, %v828
      %v1012 = vadd.f32 %v980, %v832
      %v1013 = vadd.f32 %v981, %v838
      %v1014 = vadd.f32 %v982, %v842
      %v1015 = vadd.f32 %v983, %v848
      %v1016 = vadd.f32 %v984, %v852
      %v1017 = vadd.f32 %v985, %v858
      %v1018 = vadd.f32 %v986, %v862
      %v1019 = vadd.f32 %v987, %v868
      %v1020 = vadd.f32 %v988, %v872
      %v1021 = vadd.f32 %v989, %v878
      %v1022 = vadd.f32 %v990, %v882
      %v1023 = vadd.f32 %v991, %v888
      %v1024 = vadd.f32 %v992, %v892
      %v1025 = vadd.f32 %v993, %v898
      %v1026 = vadd.f32 %v994, %v902
      %1027 = vst.msk [vmem:[%s962 + $0x2] sm:$0xff] %vm906, %v995
      %1028 = vst.msk [vmem:[%s962 + $0xa] sm:$0xff] %vm906, %v996
      %1029 = vst.msk [vmem:[%s962 + $0x1a] sm:$0xff] %vm906, %v997
      %1030 = vst.msk [vmem:[%s962 + $0x22] sm:$0xff] %vm906, %v998
      %1031 = vst.msk [vmem:[%s962 + $0x32] sm:$0xff] %vm906, %v999
      %1032 = vst.msk [vmem:[%s962 + $0x3a] sm:$0xff] %vm906, %v1000
      %1033 = vst.msk [vmem:[%s962 + $0x4a] sm:$0xff] %vm906, %v1001
      %1034 = vst.msk [vmem:[%s962 + $0x52] sm:$0xff] %vm906, %v1002
      %1035 = vst.msk [vmem:[%s962 + $0x62] sm:$0xff] %vm906, %v1003
      %1036 = vst.msk [vmem:[%s962 + $0x6a] sm:$0xff] %vm906, %v1004
      %1037 = vst.msk [vmem:[%s962 + $0x7a] sm:$0xff] %vm906, %v1005
      %1038 = vst.msk [vmem:[%s962 + $0x82] sm:$0xff] %vm906, %v1006
      %1039 = vst.msk [vmem:[%s962 + $0x92] sm:$0xff] %vm906, %v1007
      %1040 = vst.msk [vmem:[%s962 + $0x9a] sm:$0xff] %vm906, %v1008
      %1041 = vst.msk [vmem:[%s962 + $0xaa] sm:$0xff] %vm906, %v1009
      %1042 = vst.msk [vmem:[%s962 + $0xb2] sm:$0xff] %vm906, %v1010
      %1043 = vst.msk [vmem:[%s962 + $0xc2] sm:$0xff] %vm906, %v1011
      %1044 = vst.msk [vmem:[%s962 + $0xca] sm:$0xff] %vm906, %v1012
      %1045 = vst.msk [vmem:[%s962 + $0xda] sm:$0xff] %vm906, %v1013
      %1046 = vst.msk [vmem:[%s962 + $0xe2] sm:$0xff] %vm906, %v1014
      %1047 = vst.msk [vmem:[%s962 + $0xf2] sm:$0xff] %vm906, %v1015
      %1048 = vst.msk [vmem:[%s962 + $0xfa] sm:$0xff] %vm906, %v1016
      %1049 = vst.msk [vmem:[%s962 + $0x10a] sm:$0xff] %vm906, %v1017
      %1050 = vst.msk [vmem:[%s962 + $0x112] sm:$0xff] %vm906, %v1018
      %1051 = vst.msk [vmem:[%s962 + $0x122] sm:$0xff] %vm906, %v1019
      %1052 = vst.msk [vmem:[%s962 + $0x12a] sm:$0xff] %vm906, %v1020
      %1053 = vst.msk [vmem:[%s962 + $0x13a] sm:$0xff] %vm906, %v1021
      %1054 = vst.msk [vmem:[%s962 + $0x142] sm:$0xff] %vm906, %v1022
      %1055 = vst.msk [vmem:[%s962 + $0x152] sm:$0xff] %vm906, %v1023
      %1056 = vst.msk [vmem:[%s962 + $0x15a] sm:$0xff] %vm906, %v1024
      %1057 = vst.msk [vmem:[%s962 + $0x16a] sm:$0xff] %vm906, %v1025
      %1058 = vst.msk [vmem:[%s962 + $0x172] sm:$0xff] %vm906, %v1026
      %v1059 = vld [vmem:[%s962 + $0x1] sm:$0xff]
      %v1060 = vld [vmem:[%s962 + $0x9] sm:$0xff]
      %v1061 = vld [vmem:[%s962 + $0x19] sm:$0xff]
      %v1062 = vld [vmem:[%s962 + $0x21] sm:$0xff]
      %v1063 = vld [vmem:[%s962 + $0x31] sm:$0xff]
      %v1064 = vld [vmem:[%s962 + $0x39] sm:$0xff]
      %v1065 = vld [vmem:[%s962 + $0x49] sm:$0xff]
      %v1066 = vld [vmem:[%s962 + $0x51] sm:$0xff]
      %v1067 = vld [vmem:[%s962 + $0x61] sm:$0xff]
      %v1068 = vld [vmem:[%s962 + $0x69] sm:$0xff]
      %v1069 = vld [vmem:[%s962 + $0x79] sm:$0xff]
      %v1070 = vld [vmem:[%s962 + $0x81] sm:$0xff]
      %v1071 = vld [vmem:[%s962 + $0x91] sm:$0xff]
      %v1072 = vld [vmem:[%s962 + $0x99] sm:$0xff]
      %v1073 = vld [vmem:[%s962 + $0xa9] sm:$0xff]
      %v1074 = vld [vmem:[%s962 + $0xb1] sm:$0xff]
      %v1075 = vld [vmem:[%s962 + $0xc1] sm:$0xff]
      %v1076 = vld [vmem:[%s962 + $0xc9] sm:$0xff]
      %v1077 = vld [vmem:[%s962 + $0xd9] sm:$0xff]
      %v1078 = vld [vmem:[%s962 + $0xe1] sm:$0xff]
      %v1079 = vld [vmem:[%s962 + $0xf1] sm:$0xff]
      %v1080 = vld [vmem:[%s962 + $0xf9] sm:$0xff]
      %v1081 = vld [vmem:[%s962 + $0x109] sm:$0xff]
      %v1082 = vld [vmem:[%s962 + $0x111] sm:$0xff]
      %v1083 = vld [vmem:[%s962 + $0x121] sm:$0xff]
      %v1084 = vld [vmem:[%s962 + $0x129] sm:$0xff]
      %v1085 = vld [vmem:[%s962 + $0x139] sm:$0xff]
      %v1086 = vld [vmem:[%s962 + $0x141] sm:$0xff]
      %v1087 = vld [vmem:[%s962 + $0x151] sm:$0xff]
      %v1088 = vld [vmem:[%s962 + $0x159] sm:$0xff]
      %v1089 = vld [vmem:[%s962 + $0x169] sm:$0xff]
      %v1090 = vld [vmem:[%s962 + $0x171] sm:$0xff]
      %1123 = vrot.lane.b32.xlu0 %v748, 112
      %v1124 = vpop.permute.xlu0 %1123
      %1125 = vrot.lane.b32.xlu0 %v752, 112
      %v1126 = vpop.permute.xlu0 %1125
      %1127 = vrot.lane.b32.xlu0 %v758, 112
      %v1128 = vpop.permute.xlu0 %1127
      %1129 = vrot.lane.b32.xlu0 %v762, 112
      %v1130 = vpop.permute.xlu0 %1129
      %1131 = vrot.lane.b32.xlu0 %v768, 112
      %v1132 = vpop.permute.xlu0 %1131
      %1133 = vrot.lane.b32.xlu0 %v772, 112
      %v1134 = vpop.permute.xlu0 %1133
      %1135 = vrot.lane.b32.xlu0 %v778, 112
      %v1136 = vpop.permute.xlu0 %1135
      %1137 = vrot.lane.b32.xlu0 %v782, 112
      %v1138 = vpop.permute.xlu0 %1137
      %1139 = vrot.lane.b32.xlu0 %v788, 112
      %v1140 = vpop.permute.xlu0 %1139
      %1141 = vrot.lane.b32.xlu0 %v792, 112
      %v1142 = vpop.permute.xlu0 %1141
      %1143 = vrot.lane.b32.xlu0 %v798, 112
      %v1144 = vpop.permute.xlu0 %1143
      %1145 = vrot.lane.b32.xlu0 %v802, 112
      %v1146 = vpop.permute.xlu0 %1145
      %1147 = vrot.lane.b32.xlu0 %v808, 112
      %v1148 = vpop.permute.xlu0 %1147
      %1149 = vrot.lane.b32.xlu0 %v812, 112
      %v1150 = vpop.permute.xlu0 %1149
      %1151 = vrot.lane.b32.xlu0 %v818, 112
      %v1152 = vpop.permute.xlu0 %1151
      %1153 = vrot.lane.b32.xlu0 %v822, 112
      %v1154 = vpop.permute.xlu0 %1153
      %1155 = vrot.lane.b32.xlu0 %v828, 112
      %v1156 = vpop.permute.xlu0 %1155
      %1157 = vrot.lane.b32.xlu0 %v832, 112
      %v1158 = vpop.permute.xlu0 %1157
      %1159 = vrot.lane.b32.xlu0 %v838, 112
      %v1160 = vpop.permute.xlu0 %1159
      %1161 = vrot.lane.b32.xlu0 %v842, 112
      %v1162 = vpop.permute.xlu0 %1161
      %1163 = vrot.lane.b32.xlu0 %v848, 112
      %v1164 = vpop.permute.xlu0 %1163
      %1165 = vrot.lane.b32.xlu0 %v852, 112
      %v1166 = vpop.permute.xlu0 %1165
      %1167 = vrot.lane.b32.xlu0 %v858, 112
      %v1168 = vpop.permute.xlu0 %1167
      %1169 = vrot.lane.b32.xlu0 %v862, 112
      %v1170 = vpop.permute.xlu0 %1169
      %1171 = vrot.lane.b32.xlu0 %v868, 112
      %v1172 = vpop.permute.xlu0 %1171
      %1173 = vrot.lane.b32.xlu0 %v872, 112
      %v1174 = vpop.permute.xlu0 %1173
      %1175 = vrot.lane.b32.xlu0 %v878, 112
      %v1176 = vpop.permute.xlu0 %1175
      %1177 = vrot.lane.b32.xlu0 %v882, 112
      %v1178 = vpop.permute.xlu0 %1177
      %1179 = vrot.lane.b32.xlu0 %v888, 112
      %v1180 = vpop.permute.xlu0 %1179
      %1181 = vrot.lane.b32.xlu0 %v892, 112
      %v1182 = vpop.permute.xlu0 %1181
      %1183 = vrot.lane.b32.xlu0 %v898, 112
      %v1184 = vpop.permute.xlu0 %1183
      %1185 = vrot.lane.b32.xlu0 %v902, 112
      %v1186 = vpop.permute.xlu0 %1185
      %v1219 = vadd.f32 %v1059, %v1124
      %v1220 = vadd.f32 %v1060, %v1126
      %v1221 = vadd.f32 %v1061, %v1128
      %v1222 = vadd.f32 %v1062, %v1130
      %v1223 = vadd.f32 %v1063, %v1132
      %v1224 = vadd.f32 %v1064, %v1134
      %v1225 = vadd.f32 %v1065, %v1136
      %v1226 = vadd.f32 %v1066, %v1138
      %v1227 = vadd.f32 %v1067, %v1140
      %v1228 = vadd.f32 %v1068, %v1142
      %v1229 = vadd.f32 %v1069, %v1144
      %v1230 = vadd.f32 %v1070, %v1146
      %v1231 = vadd.f32 %v1071, %v1148
      %v1232 = vadd.f32 %v1072, %v1150
      %v1233 = vadd.f32 %v1073, %v1152
      %v1234 = vadd.f32 %v1074, %v1154
      %v1235 = vadd.f32 %v1075, %v1156
      %v1236 = vadd.f32 %v1076, %v1158
      %v1237 = vadd.f32 %v1077, %v1160
      %v1238 = vadd.f32 %v1078, %v1162
      %v1239 = vadd.f32 %v1079, %v1164
      %v1240 = vadd.f32 %v1080, %v1166
      %v1241 = vadd.f32 %v1081, %v1168
      %v1242 = vadd.f32 %v1082, %v1170
      %v1243 = vadd.f32 %v1083, %v1172
      %v1244 = vadd.f32 %v1084, %v1174
      %v1245 = vadd.f32 %v1085, %v1176
      %v1246 = vadd.f32 %v1086, %v1178
      %v1247 = vadd.f32 %v1087, %v1180
      %v1248 = vadd.f32 %v1088, %v1182
      %v1249 = vadd.f32 %v1089, %v1184
      %v1250 = vadd.f32 %v1090, %v1186
      %1251 = vst.msk [vmem:[%s962 + $0x1] sm:$0xff] %vm906, %v1219
      %1252 = vst.msk [vmem:[%s962 + $0x9] sm:$0xff] %vm906, %v1220
      %1253 = vst.msk [vmem:[%s962 + $0x19] sm:$0xff] %vm906, %v1221
      %1254 = vst.msk [vmem:[%s962 + $0x21] sm:$0xff] %vm906, %v1222
      %1255 = vst.msk [vmem:[%s962 + $0x31] sm:$0xff] %vm906, %v1223
      %1256 = vst.msk [vmem:[%s962 + $0x39] sm:$0xff] %vm906, %v1224
      %1257 = vst.msk [vmem:[%s962 + $0x49] sm:$0xff] %vm906, %v1225
      %1258 = vst.msk [vmem:[%s962 + $0x51] sm:$0xff] %vm906, %v1226
      %1259 = vst.msk [vmem:[%s962 + $0x61] sm:$0xff] %vm906, %v1227
      %1260 = vst.msk [vmem:[%s962 + $0x69] sm:$0xff] %vm906, %v1228
      %1261 = vst.msk [vmem:[%s962 + $0x79] sm:$0xff] %vm906, %v1229
      %1262 = vst.msk [vmem:[%s962 + $0x81] sm:$0xff] %vm906, %v1230
      %1263 = vst.msk [vmem:[%s962 + $0x91] sm:$0xff] %vm906, %v1231
      %1264 = vst.msk [vmem:[%s962 + $0x99] sm:$0xff] %vm906, %v1232
      %1265 = vst.msk [vmem:[%s962 + $0xa9] sm:$0xff] %vm906, %v1233
      %1266 = vst.msk [vmem:[%s962 + $0xb1] sm:$0xff] %vm906, %v1234
      %1267 = vst.msk [vmem:[%s962 + $0xc1] sm:$0xff] %vm906, %v1235
      %1268 = vst.msk [vmem:[%s962 + $0xc9] sm:$0xff] %vm906, %v1236
      %1269 = vst.msk [vmem:[%s962 + $0xd9] sm:$0xff] %vm906, %v1237
      %1270 = vst.msk [vmem:[%s962 + $0xe1] sm:$0xff] %vm906, %v1238
      %1271 = vst.msk [vmem:[%s962 + $0xf1] sm:$0xff] %vm906, %v1239
      %1272 = vst.msk [vmem:[%s962 + $0xf9] sm:$0xff] %vm906, %v1240
      %1273 = vst.msk [vmem:[%s962 + $0x109] sm:$0xff] %vm906, %v1241
      %1274 = vst.msk [vmem:[%s962 + $0x111] sm:$0xff] %vm906, %v1242
      %1275 = vst.msk [vmem:[%s962 + $0x121] sm:$0xff] %vm906, %v1243
      %1276 = vst.msk [vmem:[%s962 + $0x129] sm:$0xff] %vm906, %v1244
      %1277 = vst.msk [vmem:[%s962 + $0x139] sm:$0xff] %vm906, %v1245
      %1278 = vst.msk [vmem:[%s962 + $0x141] sm:$0xff] %vm906, %v1246
      %1279 = vst.msk [vmem:[%s962 + $0x151] sm:$0xff] %vm906, %v1247
      %1280 = vst.msk [vmem:[%s962 + $0x159] sm:$0xff] %vm906, %v1248
      %1281 = vst.msk [vmem:[%s962 + $0x169] sm:$0xff] %vm906, %v1249
      %1282 = vst.msk [vmem:[%s962 + $0x171] sm:$0xff] %vm906, %v1250
      %v1283 = vld [vmem:[%s962] sm:$0xff]
      %v1284 = vld [vmem:[%s962 + $0x8] sm:$0xff]
      %v1285 = vld [vmem:[%s962 + $0x18] sm:$0xff]
      %v1286 = vld [vmem:[%s962 + $0x20] sm:$0xff]
      %v1287 = vld [vmem:[%s962 + $0x30] sm:$0xff]
      %v1288 = vld [vmem:[%s962 + $0x38] sm:$0xff]
      %v1289 = vld [vmem:[%s962 + $0x48] sm:$0xff]
      %v1290 = vld [vmem:[%s962 + $0x50] sm:$0xff]
      %v1291 = vld [vmem:[%s962 + $0x60] sm:$0xff]
      %v1292 = vld [vmem:[%s962 + $0x68] sm:$0xff]
      %v1293 = vld [vmem:[%s962 + $0x78] sm:$0xff]
      %v1294 = vld [vmem:[%s962 + $0x80] sm:$0xff]
      %v1295 = vld [vmem:[%s962 + $0x90] sm:$0xff]
      %v1296 = vld [vmem:[%s962 + $0x98] sm:$0xff]
      %v1297 = vld [vmem:[%s962 + $0xa8] sm:$0xff]
      %v1298 = vld [vmem:[%s962 + $0xb0] sm:$0xff]
      %v1299 = vld [vmem:[%s962 + $0xc0] sm:$0xff]
      %v1300 = vld [vmem:[%s962 + $0xc8] sm:$0xff]
      %v1301 = vld [vmem:[%s962 + $0xd8] sm:$0xff]
      %v1302 = vld [vmem:[%s962 + $0xe0] sm:$0xff]
      %v1303 = vld [vmem:[%s962 + $0xf0] sm:$0xff]
      %v1304 = vld [vmem:[%s962 + $0xf8] sm:$0xff]
      %v1305 = vld [vmem:[%s962 + $0x108] sm:$0xff]
      %v1306 = vld [vmem:[%s962 + $0x110] sm:$0xff]
      %v1307 = vld [vmem:[%s962 + $0x120] sm:$0xff]
      %v1308 = vld [vmem:[%s962 + $0x128] sm:$0xff]
      %v1309 = vld [vmem:[%s962 + $0x138] sm:$0xff]
      %v1310 = vld [vmem:[%s962 + $0x140] sm:$0xff]
      %v1311 = vld [vmem:[%s962 + $0x150] sm:$0xff]
      %v1312 = vld [vmem:[%s962 + $0x158] sm:$0xff]
      %v1313 = vld [vmem:[%s962 + $0x168] sm:$0xff]
      %v1314 = vld [vmem:[%s962 + $0x170] sm:$0xff]
      %1315 = vrot.lane.b32.xlu0 %v748, 96
      %v1316 = vpop.permute.xlu0 %1315
      %1317 = vrot.lane.b32.xlu0 %v752, 96
      %v1318 = vpop.permute.xlu0 %1317
      %1319 = vrot.lane.b32.xlu0 %v758, 96
      %v1320 = vpop.permute.xlu0 %1319
      %1321 = vrot.lane.b32.xlu0 %v762, 96
      %v1322 = vpop.permute.xlu0 %1321
      %1323 = vrot.lane.b32.xlu0 %v768, 96
      %v1324 = vpop.permute.xlu0 %1323
      %1325 = vrot.lane.b32.xlu0 %v772, 96
      %v1326 = vpop.permute.xlu0 %1325
      %1327 = vrot.lane.b32.xlu0 %v778, 96
      %v1328 = vpop.permute.xlu0 %1327
      %1329 = vrot.lane.b32.xlu0 %v782, 96
      %v1330 = vpop.permute.xlu0 %1329
      %1331 = vrot.lane.b32.xlu0 %v788, 96
      %v1332 = vpop.permute.xlu0 %1331
      %1333 = vrot.lane.b32.xlu0 %v792, 96
      %v1334 = vpop.permute.xlu0 %1333
      %1335 = vrot.lane.b32.xlu0 %v798, 96
      %v1336 = vpop.permute.xlu0 %1335
      %1337 = vrot.lane.b32.xlu0 %v802, 96
      %v1338 = vpop.permute.xlu0 %1337
      %1339 = vrot.lane.b32.xlu0 %v808, 96
      %v1340 = vpop.permute.xlu0 %1339
      %1341 = vrot.lane.b32.xlu0 %v812, 96
      %v1342 = vpop.permute.xlu0 %1341
      %1343 = vrot.lane.b32.xlu0 %v818, 96
      %v1344 = vpop.permute.xlu0 %1343
      %1345 = vrot.lane.b32.xlu0 %v822, 96
      %v1346 = vpop.permute.xlu0 %1345
      %1347 = vrot.lane.b32.xlu0 %v828, 96
      %v1348 = vpop.permute.xlu0 %1347
      %1349 = vrot.lane.b32.xlu0 %v832, 96
      %v1350 = vpop.permute.xlu0 %1349
      %1351 = vrot.lane.b32.xlu0 %v838, 96
      %v1352 = vpop.permute.xlu0 %1351
      %1353 = vrot.lane.b32.xlu0 %v842, 96
      %v1354 = vpop.permute.xlu0 %1353
      %1355 = vrot.lane.b32.xlu0 %v848, 96
      %v1356 = vpop.permute.xlu0 %1355
      %1357 = vrot.lane.b32.xlu0 %v852, 96
      %v1358 = vpop.permute.xlu0 %1357
      %1359 = vrot.lane.b32.xlu0 %v858, 96
      %v1360 = vpop.permute.xlu0 %1359
      %1361 = vrot.lane.b32.xlu0 %v862, 96
      %v1362 = vpop.permute.xlu0 %1361
      %1363 = vrot.lane.b32.xlu0 %v868, 96
      %v1364 = vpop.permute.xlu0 %1363
      %1365 = vrot.lane.b32.xlu0 %v872, 96
      %v1366 = vpop.permute.xlu0 %1365
      %1367 = vrot.lane.b32.xlu0 %v878, 96
      %v1368 = vpop.permute.xlu0 %1367
      %1369 = vrot.lane.b32.xlu0 %v882, 96
      %v1370 = vpop.permute.xlu0 %1369
      %1371 = vrot.lane.b32.xlu0 %v888, 96
      %v1372 = vpop.permute.xlu0 %1371
      %1373 = vrot.lane.b32.xlu0 %v892, 96
      %v1374 = vpop.permute.xlu0 %1373
      %1375 = vrot.lane.b32.xlu0 %v898, 96
      %v1376 = vpop.permute.xlu0 %1375
      %1377 = vrot.lane.b32.xlu0 %v902, 96
      %v1378 = vpop.permute.xlu0 %1377
      %v1411 = vadd.f32 %v1283, %v1316
      %v1412 = vadd.f32 %v1284, %v1318
      %v1413 = vadd.f32 %v1285, %v1320
      %v1414 = vadd.f32 %v1286, %v1322
      %v1415 = vadd.f32 %v1287, %v1324
      %v1416 = vadd.f32 %v1288, %v1326
      %v1417 = vadd.f32 %v1289, %v1328
      %v1418 = vadd.f32 %v1290, %v1330
      %v1419 = vadd.f32 %v1291, %v1332
      %v1420 = vadd.f32 %v1292, %v1334
      %v1421 = vadd.f32 %v1293, %v1336
      %v1422 = vadd.f32 %v1294, %v1338
      %v1423 = vadd.f32 %v1295, %v1340
      %v1424 = vadd.f32 %v1296, %v1342
      %v1425 = vadd.f32 %v1297, %v1344
      %v1426 = vadd.f32 %v1298, %v1346
      %v1427 = vadd.f32 %v1299, %v1348
      %v1428 = vadd.f32 %v1300, %v1350
      %v1429 = vadd.f32 %v1301, %v1352
      %v1430 = vadd.f32 %v1302, %v1354
      %v1431 = vadd.f32 %v1303, %v1356
      %v1432 = vadd.f32 %v1304, %v1358
      %v1433 = vadd.f32 %v1305, %v1360
      %v1434 = vadd.f32 %v1306, %v1362
      %v1435 = vadd.f32 %v1307, %v1364
      %v1436 = vadd.f32 %v1308, %v1366
      %v1437 = vadd.f32 %v1309, %v1368
      %v1438 = vadd.f32 %v1310, %v1370
      %v1439 = vadd.f32 %v1311, %v1372
      %v1440 = vadd.f32 %v1312, %v1374
      %v1441 = vadd.f32 %v1313, %v1376
      %v1442 = vadd.f32 %v1314, %v1378
      %1443 = vst.msk [vmem:[%s962] sm:$0xff] %vm906, %v1411
      %1444 = vst.msk [vmem:[%s962 + $0x8] sm:$0xff] %vm906, %v1412
      %1445 = vst.msk [vmem:[%s962 + $0x18] sm:$0xff] %vm906, %v1413
      %1446 = vst.msk [vmem:[%s962 + $0x20] sm:$0xff] %vm906, %v1414
      %1447 = vst.msk [vmem:[%s962 + $0x30] sm:$0xff] %vm906, %v1415
      %1448 = vst.msk [vmem:[%s962 + $0x38] sm:$0xff] %vm906, %v1416
      %1449 = vst.msk [vmem:[%s962 + $0x48] sm:$0xff] %vm906, %v1417
      %1450 = vst.msk [vmem:[%s962 + $0x50] sm:$0xff] %vm906, %v1418
      %1451 = vst.msk [vmem:[%s962 + $0x60] sm:$0xff] %vm906, %v1419
      %1452 = vst.msk [vmem:[%s962 + $0x68] sm:$0xff] %vm906, %v1420
      %1453 = vst.msk [vmem:[%s962 + $0x78] sm:$0xff] %vm906, %v1421
      %1454 = vst.msk [vmem:[%s962 + $0x80] sm:$0xff] %vm906, %v1422
      %1455 = vst.msk [vmem:[%s962 + $0x90] sm:$0xff] %vm906, %v1423
      %1456 = vst.msk [vmem:[%s962 + $0x98] sm:$0xff] %vm906, %v1424
      %1457 = vst.msk [vmem:[%s962 + $0xa8] sm:$0xff] %vm906, %v1425
      %1458 = vst.msk [vmem:[%s962 + $0xb0] sm:$0xff] %vm906, %v1426
      %1459 = vst.msk [vmem:[%s962 + $0xc0] sm:$0xff] %vm906, %v1427
      %1460 = vst.msk [vmem:[%s962 + $0xc8] sm:$0xff] %vm906, %v1428
      %1461 = vst.msk [vmem:[%s962 + $0xd8] sm:$0xff] %vm906, %v1429
      %1462 = vst.msk [vmem:[%s962 + $0xe0] sm:$0xff] %vm906, %v1430
      %1463 = vst.msk [vmem:[%s962 + $0xf0] sm:$0xff] %vm906, %v1431
      %1464 = vst.msk [vmem:[%s962 + $0xf8] sm:$0xff] %vm906, %v1432
      %1465 = vst.msk [vmem:[%s962 + $0x108] sm:$0xff] %vm906, %v1433
      %1466 = vst.msk [vmem:[%s962 + $0x110] sm:$0xff] %vm906, %v1434
      %1467 = vst.msk [vmem:[%s962 + $0x120] sm:$0xff] %vm906, %v1435
      %1468 = vst.msk [vmem:[%s962 + $0x128] sm:$0xff] %vm906, %v1436
      %1469 = vst.msk [vmem:[%s962 + $0x138] sm:$0xff] %vm906, %v1437
      %1470 = vst.msk [vmem:[%s962 + $0x140] sm:$0xff] %vm906, %v1438
      %1471 = vst.msk [vmem:[%s962 + $0x150] sm:$0xff] %vm906, %v1439
      %1472 = vst.msk [vmem:[%s962 + $0x158] sm:$0xff] %vm906, %v1440
      %1473 = vst.msk [vmem:[%s962 + $0x168] sm:$0xff] %vm906, %v1441
      %1474 = vst.msk [vmem:[%s962 + $0x170] sm:$0xff] %vm906, %v1442
      %s1475 = scalar_lea.vmem %s197, 24
      %v1476 = vld [vmem:[%s1475 + $0x2] sm:$0xff]
      %v1477 = vld [vmem:[%s1475 + $0xa] sm:$0xff]
      %v1478 = vld [vmem:[%s1475 + $0x1a] sm:$0xff]
      %v1479 = vld [vmem:[%s1475 + $0x22] sm:$0xff]
      %v1480 = vld [vmem:[%s1475 + $0x32] sm:$0xff]
      %v1481 = vld [vmem:[%s1475 + $0x3a] sm:$0xff]
      %v1482 = vld [vmem:[%s1475 + $0x4a] sm:$0xff]
      %v1483 = vld [vmem:[%s1475 + $0x52] sm:$0xff]
      %v1484 = vld [vmem:[%s1475 + $0x62] sm:$0xff]
      %v1485 = vld [vmem:[%s1475 + $0x6a] sm:$0xff]
      %v1486 = vld [vmem:[%s1475 + $0x7a] sm:$0xff]
      %v1487 = vld [vmem:[%s1475 + $0x82] sm:$0xff]
      %v1488 = vld [vmem:[%s1475 + $0x92] sm:$0xff]
      %v1489 = vld [vmem:[%s1475 + $0x9a] sm:$0xff]
      %v1490 = vld [vmem:[%s1475 + $0xaa] sm:$0xff]
      %v1491 = vld [vmem:[%s1475 + $0xb2] sm:$0xff]
      %v1492 = vld [vmem:[%s1475 + $0xc2] sm:$0xff]
      %v1493 = vld [vmem:[%s1475 + $0xca] sm:$0xff]
      %v1494 = vld [vmem:[%s1475 + $0xda] sm:$0xff]
      %v1495 = vld [vmem:[%s1475 + $0xe2] sm:$0xff]
      %v1496 = vld [vmem:[%s1475 + $0xf2] sm:$0xff]
      %v1497 = vld [vmem:[%s1475 + $0xfa] sm:$0xff]
      %v1498 = vld [vmem:[%s1475 + $0x10a] sm:$0xff]
      %v1499 = vld [vmem:[%s1475 + $0x112] sm:$0xff]
      %v1500 = vld [vmem:[%s1475 + $0x122] sm:$0xff]
      %v1501 = vld [vmem:[%s1475 + $0x12a] sm:$0xff]
      %v1502 = vld [vmem:[%s1475 + $0x13a] sm:$0xff]
      %v1503 = vld [vmem:[%s1475 + $0x142] sm:$0xff]
      %v1504 = vld [vmem:[%s1475 + $0x152] sm:$0xff]
      %v1505 = vld [vmem:[%s1475 + $0x15a] sm:$0xff]
      %v1506 = vld [vmem:[%s1475 + $0x16a] sm:$0xff]
      %v1507 = vld [vmem:[%s1475 + $0x172] sm:$0xff]
      %1508 = vrot.lane.b32.xlu0 %v748, 80
      %v1509 = vpop.permute.xlu0 %1508
      %1510 = vrot.lane.b32.xlu0 %v752, 80
      %v1511 = vpop.permute.xlu0 %1510
      %1512 = vrot.lane.b32.xlu0 %v758, 80
      %v1513 = vpop.permute.xlu0 %1512
      %1514 = vrot.lane.b32.xlu0 %v762, 80
      %v1515 = vpop.permute.xlu0 %1514
      %1516 = vrot.lane.b32.xlu0 %v768, 80
      %v1517 = vpop.permute.xlu0 %1516
      %1518 = vrot.lane.b32.xlu0 %v772, 80
      %v1519 = vpop.permute.xlu0 %1518
      %1520 = vrot.lane.b32.xlu0 %v778, 80
      %v1521 = vpop.permute.xlu0 %1520
      %1522 = vrot.lane.b32.xlu0 %v782, 80
      %v1523 = vpop.permute.xlu0 %1522
      %1524 = vrot.lane.b32.xlu0 %v788, 80
      %v1525 = vpop.permute.xlu0 %1524
      %1526 = vrot.lane.b32.xlu0 %v792, 80
      %v1527 = vpop.permute.xlu0 %1526
      %1528 = vrot.lane.b32.xlu0 %v798, 80
      %v1529 = vpop.permute.xlu0 %1528
      %1530 = vrot.lane.b32.xlu0 %v802, 80
      %v1531 = vpop.permute.xlu0 %1530
      %1532 = vrot.lane.b32.xlu0 %v808, 80
      %v1533 = vpop.permute.xlu0 %1532
      %1534 = vrot.lane.b32.xlu0 %v812, 80
      %v1535 = vpop.permute.xlu0 %1534
      %1536 = vrot.lane.b32.xlu0 %v818, 80
      %v1537 = vpop.permute.xlu0 %1536
      %1538 = vrot.lane.b32.xlu0 %v822, 80
      %v1539 = vpop.permute.xlu0 %1538
      %1540 = vrot.lane.b32.xlu0 %v828, 80
      %v1541 = vpop.permute.xlu0 %1540
      %1542 = vrot.lane.b32.xlu0 %v832, 80
      %v1543 = vpop.permute.xlu0 %1542
      %1544 = vrot.lane.b32.xlu0 %v838, 80
      %v1545 = vpop.permute.xlu0 %1544
      %1546 = vrot.lane.b32.xlu0 %v842, 80
      %v1547 = vpop.permute.xlu0 %1546
      %1548 = vrot.lane.b32.xlu0 %v848, 80
      %v1549 = vpop.permute.xlu0 %1548
      %1550 = vrot.lane.b32.xlu0 %v852, 80
      %v1551 = vpop.permute.xlu0 %1550
      %1552 = vrot.lane.b32.xlu0 %v858, 80
      %v1553 = vpop.permute.xlu0 %1552
      %1554 = vrot.lane.b32.xlu0 %v862, 80
      %v1555 = vpop.permute.xlu0 %1554
      %1556 = vrot.lane.b32.xlu0 %v868, 80
      %v1557 = vpop.permute.xlu0 %1556
      %1558 = vrot.lane.b32.xlu0 %v872, 80
      %v1559 = vpop.permute.xlu0 %1558
      %1560 = vrot.lane.b32.xlu0 %v878, 80
      %v1561 = vpop.permute.xlu0 %1560
      %1562 = vrot.lane.b32.xlu0 %v882, 80
      %v1563 = vpop.permute.xlu0 %1562
      %1564 = vrot.lane.b32.xlu0 %v888, 80
      %v1565 = vpop.permute.xlu0 %1564
      %1566 = vrot.lane.b32.xlu0 %v892, 80
      %v1567 = vpop.permute.xlu0 %1566
      %1568 = vrot.lane.b32.xlu0 %v898, 80
      %v1569 = vpop.permute.xlu0 %1568
      %1570 = vrot.lane.b32.xlu0 %v902, 80
      %v1571 = vpop.permute.xlu0 %1570
      %v1604 = vadd.f32 %v1476, %v1509
      %v1605 = vadd.f32 %v1477, %v1511
      %v1606 = vadd.f32 %v1478, %v1513
      %v1607 = vadd.f32 %v1479, %v1515
      %v1608 = vadd.f32 %v1480, %v1517
      %v1609 = vadd.f32 %v1481, %v1519
      %v1610 = vadd.f32 %v1482, %v1521
      %v1611 = vadd.f32 %v1483, %v1523
      %v1612 = vadd.f32 %v1484, %v1525
      %v1613 = vadd.f32 %v1485, %v1527
      %v1614 = vadd.f32 %v1486, %v1529
      %v1615 = vadd.f32 %v1487, %v1531
      %v1616 = vadd.f32 %v1488, %v1533
      %v1617 = vadd.f32 %v1489, %v1535
      %v1618 = vadd.f32 %v1490, %v1537
      %v1619 = vadd.f32 %v1491, %v1539
      %v1620 = vadd.f32 %v1492, %v1541
      %v1621 = vadd.f32 %v1493, %v1543
      %v1622 = vadd.f32 %v1494, %v1545
      %v1623 = vadd.f32 %v1495, %v1547
      %v1624 = vadd.f32 %v1496, %v1549
      %v1625 = vadd.f32 %v1497, %v1551
      %v1626 = vadd.f32 %v1498, %v1553
      %v1627 = vadd.f32 %v1499, %v1555
      %v1628 = vadd.f32 %v1500, %v1557
      %v1629 = vadd.f32 %v1501, %v1559
      %v1630 = vadd.f32 %v1502, %v1561
      %v1631 = vadd.f32 %v1503, %v1563
      %v1632 = vadd.f32 %v1504, %v1565
      %v1633 = vadd.f32 %v1505, %v1567
      %v1634 = vadd.f32 %v1506, %v1569
      %v1635 = vadd.f32 %v1507, %v1571
      %1636 = vst.msk [vmem:[%s1475 + $0x2] sm:$0xff] %vm906, %v1604
      %1637 = vst.msk [vmem:[%s1475 + $0xa] sm:$0xff] %vm906, %v1605
      %1638 = vst.msk [vmem:[%s1475 + $0x1a] sm:$0xff] %vm906, %v1606
      %1639 = vst.msk [vmem:[%s1475 + $0x22] sm:$0xff] %vm906, %v1607
      %1640 = vst.msk [vmem:[%s1475 + $0x32] sm:$0xff] %vm906, %v1608
      %1641 = vst.msk [vmem:[%s1475 + $0x3a] sm:$0xff] %vm906, %v1609
      %1642 = vst.msk [vmem:[%s1475 + $0x4a] sm:$0xff] %vm906, %v1610
      %1643 = vst.msk [vmem:[%s1475 + $0x52] sm:$0xff] %vm906, %v1611
      %1644 = vst.msk [vmem:[%s1475 + $0x62] sm:$0xff] %vm906, %v1612
      %1645 = vst.msk [vmem:[%s1475 + $0x6a] sm:$0xff] %vm906, %v1613
      %1646 = vst.msk [vmem:[%s1475 + $0x7a] sm:$0xff] %vm906, %v1614
      %1647 = vst.msk [vmem:[%s1475 + $0x82] sm:$0xff] %vm906, %v1615
      %1648 = vst.msk [vmem:[%s1475 + $0x92] sm:$0xff] %vm906, %v1616
      %1649 = vst.msk [vmem:[%s1475 + $0x9a] sm:$0xff] %vm906, %v1617
      %1650 = vst.msk [vmem:[%s1475 + $0xaa] sm:$0xff] %vm906, %v1618
      %1651 = vst.msk [vmem:[%s1475 + $0xb2] sm:$0xff] %vm906, %v1619
      %1652 = vst.msk [vmem:[%s1475 + $0xc2] sm:$0xff] %vm906, %v1620
      %1653 = vst.msk [vmem:[%s1475 + $0xca] sm:$0xff] %vm906, %v1621
      %1654 = vst.msk [vmem:[%s1475 + $0xda] sm:$0xff] %vm906, %v1622
      %1655 = vst.msk [vmem:[%s1475 + $0xe2] sm:$0xff] %vm906, %v1623
      %1656 = vst.msk [vmem:[%s1475 + $0xf2] sm:$0xff] %vm906, %v1624
      %1657 = vst.msk [vmem:[%s1475 + $0xfa] sm:$0xff] %vm906, %v1625
      %1658 = vst.msk [vmem:[%s1475 + $0x10a] sm:$0xff] %vm906, %v1626
      %1659 = vst.msk [vmem:[%s1475 + $0x112] sm:$0xff] %vm906, %v1627
      %1660 = vst.msk [vmem:[%s1475 + $0x122] sm:$0xff] %vm906, %v1628
      %1661 = vst.msk [vmem:[%s1475 + $0x12a] sm:$0xff] %vm906, %v1629
      %1662 = vst.msk [vmem:[%s1475 + $0x13a] sm:$0xff] %vm906, %v1630
      %1663 = vst.msk [vmem:[%s1475 + $0x142] sm:$0xff] %vm906, %v1631
      %1664 = vst.msk [vmem:[%s1475 + $0x152] sm:$0xff] %vm906, %v1632
      %1665 = vst.msk [vmem:[%s1475 + $0x15a] sm:$0xff] %vm906, %v1633
      %1666 = vst.msk [vmem:[%s1475 + $0x16a] sm:$0xff] %vm906, %v1634
      %1667 = vst.msk [vmem:[%s1475 + $0x172] sm:$0xff] %vm906, %v1635
      %v1668 = vld [vmem:[%s1475 + $0x1] sm:$0xff]
      %v1669 = vld [vmem:[%s1475 + $0x9] sm:$0xff]
      %v1670 = vld [vmem:[%s1475 + $0x19] sm:$0xff]
      %v1671 = vld [vmem:[%s1475 + $0x21] sm:$0xff]
      %v1672 = vld [vmem:[%s1475 + $0x31] sm:$0xff]
      %v1673 = vld [vmem:[%s1475 + $0x39] sm:$0xff]
      %v1674 = vld [vmem:[%s1475 + $0x49] sm:$0xff]
      %v1675 = vld [vmem:[%s1475 + $0x51] sm:$0xff]
      %v1676 = vld [vmem:[%s1475 + $0x61] sm:$0xff]
      %v1677 = vld [vmem:[%s1475 + $0x69] sm:$0xff]
      %v1678 = vld [vmem:[%s1475 + $0x79] sm:$0xff]
      %v1679 = vld [vmem:[%s1475 + $0x81] sm:$0xff]
      %v1680 = vld [vmem:[%s1475 + $0x91] sm:$0xff]
      %v1681 = vld [vmem:[%s1475 + $0x99] sm:$0xff]
      %v1682 = vld [vmem:[%s1475 + $0xa9] sm:$0xff]
      %v1683 = vld [vmem:[%s1475 + $0xb1] sm:$0xff]
      %v1684 = vld [vmem:[%s1475 + $0xc1] sm:$0xff]
      %v1685 = vld [vmem:[%s1475 + $0xc9] sm:$0xff]
      %v1686 = vld [vmem:[%s1475 + $0xd9] sm:$0xff]
      %v1687 = vld [vmem:[%s1475 + $0xe1] sm:$0xff]
      %v1688 = vld [vmem:[%s1475 + $0xf1] sm:$0xff]
      %v1689 = vld [vmem:[%s1475 + $0xf9] sm:$0xff]
      %v1690 = vld [vmem:[%s1475 + $0x109] sm:$0xff]
      %v1691 = vld [vmem:[%s1475 + $0x111] sm:$0xff]
      %v1692 = vld [vmem:[%s1475 + $0x121] sm:$0xff]
      %v1693 = vld [vmem:[%s1475 + $0x129] sm:$0xff]
      %v1694 = vld [vmem:[%s1475 + $0x139] sm:$0xff]
      %v1695 = vld [vmem:[%s1475 + $0x141] sm:$0xff]
      %v1696 = vld [vmem:[%s1475 + $0x151] sm:$0xff]
      %v1697 = vld [vmem:[%s1475 + $0x159] sm:$0xff]
      %v1698 = vld [vmem:[%s1475 + $0x169] sm:$0xff]
      %v1699 = vld [vmem:[%s1475 + $0x171] sm:$0xff]
      %1700 = vrot.lane.b32.xlu0 %v748, 64
      %v1701 = vpop.permute.xlu0 %1700
      %1702 = vrot.lane.b32.xlu0 %v752, 64
      %v1703 = vpop.permute.xlu0 %1702
      %1704 = vrot.lane.b32.xlu0 %v758, 64
      %v1705 = vpop.permute.xlu0 %1704
      %1706 = vrot.lane.b32.xlu0 %v762, 64
      %v1707 = vpop.permute.xlu0 %1706
      %1708 = vrot.lane.b32.xlu0 %v768, 64
      %v1709 = vpop.permute.xlu0 %1708
      %1710 = vrot.lane.b32.xlu0 %v772, 64
      %v1711 = vpop.permute.xlu0 %1710
      %1712 = vrot.lane.b32.xlu0 %v778, 64
      %v1713 = vpop.permute.xlu0 %1712
      %1714 = vrot.lane.b32.xlu0 %v782, 64
      %v1715 = vpop.permute.xlu0 %1714
      %1716 = vrot.lane.b32.xlu0 %v788, 64
      %v1717 = vpop.permute.xlu0 %1716
      %1718 = vrot.lane.b32.xlu0 %v792, 64
      %v1719 = vpop.permute.xlu0 %1718
      %1720 = vrot.lane.b32.xlu0 %v798, 64
      %v1721 = vpop.permute.xlu0 %1720
      %1722 = vrot.lane.b32.xlu0 %v802, 64
      %v1723 = vpop.permute.xlu0 %1722
      %1724 = vrot.lane.b32.xlu0 %v808, 64
      %v1725 = vpop.permute.xlu0 %1724
      %1726 = vrot.lane.b32.xlu0 %v812, 64
      %v1727 = vpop.permute.xlu0 %1726
      %1728 = vrot.lane.b32.xlu0 %v818, 64
      %v1729 = vpop.permute.xlu0 %1728
      %1730 = vrot.lane.b32.xlu0 %v822, 64
      %v1731 = vpop.permute.xlu0 %1730
      %1732 = vrot.lane.b32.xlu0 %v828, 64
      %v1733 = vpop.permute.xlu0 %1732
      %1734 = vrot.lane.b32.xlu0 %v832, 64
      %v1735 = vpop.permute.xlu0 %1734
      %1736 = vrot.lane.b32.xlu0 %v838, 64
      %v1737 = vpop.permute.xlu0 %1736
      %1738 = vrot.lane.b32.xlu0 %v842, 64
      %v1739 = vpop.permute.xlu0 %1738
      %1740 = vrot.lane.b32.xlu0 %v848, 64
      %v1741 = vpop.permute.xlu0 %1740
      %1742 = vrot.lane.b32.xlu0 %v852, 64
      %v1743 = vpop.permute.xlu0 %1742
      %1744 = vrot.lane.b32.xlu0 %v858, 64
      %v1745 = vpop.permute.xlu0 %1744
      %1746 = vrot.lane.b32.xlu0 %v862, 64
      %v1747 = vpop.permute.xlu0 %1746
      %1748 = vrot.lane.b32.xlu0 %v868, 64
      %v1749 = vpop.permute.xlu0 %1748
      %1750 = vrot.lane.b32.xlu0 %v872, 64
      %v1751 = vpop.permute.xlu0 %1750
      %1752 = vrot.lane.b32.xlu0 %v878, 64
      %v1753 = vpop.permute.xlu0 %1752
      %1754 = vrot.lane.b32.xlu0 %v882, 64
      %v1755 = vpop.permute.xlu0 %1754
      %1756 = vrot.lane.b32.xlu0 %v888, 64
      %v1757 = vpop.permute.xlu0 %1756
      %1758 = vrot.lane.b32.xlu0 %v892, 64
      %v1759 = vpop.permute.xlu0 %1758
      %1760 = vrot.lane.b32.xlu0 %v898, 64
      %v1761 = vpop.permute.xlu0 %1760
      %1762 = vrot.lane.b32.xlu0 %v902, 64
      %v1763 = vpop.permute.xlu0 %1762
      %v1796 = vadd.f32 %v1668, %v1701
      %v1797 = vadd.f32 %v1669, %v1703
      %v1798 = vadd.f32 %v1670, %v1705
      %v1799 = vadd.f32 %v1671, %v1707
      %v1800 = vadd.f32 %v1672, %v1709
      %v1801 = vadd.f32 %v1673, %v1711
      %v1802 = vadd.f32 %v1674, %v1713
      %v1803 = vadd.f32 %v1675, %v1715
      %v1804 = vadd.f32 %v1676, %v1717
      %v1805 = vadd.f32 %v1677, %v1719
      %v1806 = vadd.f32 %v1678, %v1721
      %v1807 = vadd.f32 %v1679, %v1723
      %v1808 = vadd.f32 %v1680, %v1725
      %v1809 = vadd.f32 %v1681, %v1727
      %v1810 = vadd.f32 %v1682, %v1729
      %v1811 = vadd.f32 %v1683, %v1731
      %v1812 = vadd.f32 %v1684, %v1733
      %v1813 = vadd.f32 %v1685, %v1735
      %v1814 = vadd.f32 %v1686, %v1737
      %v1815 = vadd.f32 %v1687, %v1739
      %v1816 = vadd.f32 %v1688, %v1741
      %v1817 = vadd.f32 %v1689, %v1743
      %v1818 = vadd.f32 %v1690, %v1745
      %v1819 = vadd.f32 %v1691, %v1747
      %v1820 = vadd.f32 %v1692, %v1749
      %v1821 = vadd.f32 %v1693, %v1751
      %v1822 = vadd.f32 %v1694, %v1753
      %v1823 = vadd.f32 %v1695, %v1755
      %v1824 = vadd.f32 %v1696, %v1757
      %v1825 = vadd.f32 %v1697, %v1759
      %v1826 = vadd.f32 %v1698, %v1761
      %v1827 = vadd.f32 %v1699, %v1763
      %1828 = vst.msk [vmem:[%s1475 + $0x1] sm:$0xff] %vm906, %v1796
      %1829 = vst.msk [vmem:[%s1475 + $0x9] sm:$0xff] %vm906, %v1797
      %1830 = vst.msk [vmem:[%s1475 + $0x19] sm:$0xff] %vm906, %v1798
      %1831 = vst.msk [vmem:[%s1475 + $0x21] sm:$0xff] %vm906, %v1799
      %1832 = vst.msk [vmem:[%s1475 + $0x31] sm:$0xff] %vm906, %v1800
      %1833 = vst.msk [vmem:[%s1475 + $0x39] sm:$0xff] %vm906, %v1801
      %1834 = vst.msk [vmem:[%s1475 + $0x49] sm:$0xff] %vm906, %v1802
      %1835 = vst.msk [vmem:[%s1475 + $0x51] sm:$0xff] %vm906, %v1803
      %1836 = vst.msk [vmem:[%s1475 + $0x61] sm:$0xff] %vm906, %v1804
      %1837 = vst.msk [vmem:[%s1475 + $0x69] sm:$0xff] %vm906, %v1805
      %1838 = vst.msk [vmem:[%s1475 + $0x79] sm:$0xff] %vm906, %v1806
      %1839 = vst.msk [vmem:[%s1475 + $0x81] sm:$0xff] %vm906, %v1807
      %1840 = vst.msk [vmem:[%s1475 + $0x91] sm:$0xff] %vm906, %v1808
      %1841 = vst.msk [vmem:[%s1475 + $0x99] sm:$0xff] %vm906, %v1809
      %1842 = vst.msk [vmem:[%s1475 + $0xa9] sm:$0xff] %vm906, %v1810
      %1843 = vst.msk [vmem:[%s1475 + $0xb1] sm:$0xff] %vm906, %v1811
      %1844 = vst.msk [vmem:[%s1475 + $0xc1] sm:$0xff] %vm906, %v1812
      %1845 = vst.msk [vmem:[%s1475 + $0xc9] sm:$0xff] %vm906, %v1813
      %1846 = vst.msk [vmem:[%s1475 + $0xd9] sm:$0xff] %vm906, %v1814
      %1847 = vst.msk [vmem:[%s1475 + $0xe1] sm:$0xff] %vm906, %v1815
      %1848 = vst.msk [vmem:[%s1475 + $0xf1] sm:$0xff] %vm906, %v1816
      %1849 = vst.msk [vmem:[%s1475 + $0xf9] sm:$0xff] %vm906, %v1817
      %1850 = vst.msk [vmem:[%s1475 + $0x109] sm:$0xff] %vm906, %v1818
      %1851 = vst.msk [vmem:[%s1475 + $0x111] sm:$0xff] %vm906, %v1819
      %1852 = vst.msk [vmem:[%s1475 + $0x121] sm:$0xff] %vm906, %v1820
      %1853 = vst.msk [vmem:[%s1475 + $0x129] sm:$0xff] %vm906, %v1821
      %1854 = vst.msk [vmem:[%s1475 + $0x139] sm:$0xff] %vm906, %v1822
      %1855 = vst.msk [vmem:[%s1475 + $0x141] sm:$0xff] %vm906, %v1823
      %1856 = vst.msk [vmem:[%s1475 + $0x151] sm:$0xff] %vm906, %v1824
      %1857 = vst.msk [vmem:[%s1475 + $0x159] sm:$0xff] %vm906, %v1825
      %1858 = vst.msk [vmem:[%s1475 + $0x169] sm:$0xff] %vm906, %v1826
      %1859 = vst.msk [vmem:[%s1475 + $0x171] sm:$0xff] %vm906, %v1827
      %v1860 = vld [vmem:[%s1475] sm:$0xff]
      %v1861 = vld [vmem:[%s1475 + $0x8] sm:$0xff]
      %v1862 = vld [vmem:[%s1475 + $0x18] sm:$0xff]
      %v1863 = vld [vmem:[%s1475 + $0x20] sm:$0xff]
      %v1864 = vld [vmem:[%s1475 + $0x30] sm:$0xff]
      %v1865 = vld [vmem:[%s1475 + $0x38] sm:$0xff]
      %v1866 = vld [vmem:[%s1475 + $0x48] sm:$0xff]
      %v1867 = vld [vmem:[%s1475 + $0x50] sm:$0xff]
      %v1868 = vld [vmem:[%s1475 + $0x60] sm:$0xff]
      %v1869 = vld [vmem:[%s1475 + $0x68] sm:$0xff]
      %v1870 = vld [vmem:[%s1475 + $0x78] sm:$0xff]
      %v1871 = vld [vmem:[%s1475 + $0x80] sm:$0xff]
      %v1872 = vld [vmem:[%s1475 + $0x90] sm:$0xff]
      %v1873 = vld [vmem:[%s1475 + $0x98] sm:$0xff]
      %v1874 = vld [vmem:[%s1475 + $0xa8] sm:$0xff]
      %v1875 = vld [vmem:[%s1475 + $0xb0] sm:$0xff]
      %v1876 = vld [vmem:[%s1475 + $0xc0] sm:$0xff]
      %v1877 = vld [vmem:[%s1475 + $0xc8] sm:$0xff]
      %v1878 = vld [vmem:[%s1475 + $0xd8] sm:$0xff]
      %v1879 = vld [vmem:[%s1475 + $0xe0] sm:$0xff]
      %v1880 = vld [vmem:[%s1475 + $0xf0] sm:$0xff]
      %v1881 = vld [vmem:[%s1475 + $0xf8] sm:$0xff]
      %v1882 = vld [vmem:[%s1475 + $0x108] sm:$0xff]
      %v1883 = vld [vmem:[%s1475 + $0x110] sm:$0xff]
      %v1884 = vld [vmem:[%s1475 + $0x120] sm:$0xff]
      %v1885 = vld [vmem:[%s1475 + $0x128] sm:$0xff]
      %v1886 = vld [vmem:[%s1475 + $0x138] sm:$0xff]
      %v1887 = vld [vmem:[%s1475 + $0x140] sm:$0xff]
      %v1888 = vld [vmem:[%s1475 + $0x150] sm:$0xff]
      %v1889 = vld [vmem:[%s1475 + $0x158] sm:$0xff]
      %v1890 = vld [vmem:[%s1475 + $0x168] sm:$0xff]
      %v1891 = vld [vmem:[%s1475 + $0x170] sm:$0xff]
      %1892 = vrot.lane.b32.xlu0 %v748, 48
      %v1893 = vpop.permute.xlu0 %1892
      %1894 = vrot.lane.b32.xlu0 %v752, 48
      %v1895 = vpop.permute.xlu0 %1894
      %1896 = vrot.lane.b32.xlu0 %v758, 48
      %v1897 = vpop.permute.xlu0 %1896
      %1898 = vrot.lane.b32.xlu0 %v762, 48
      %v1899 = vpop.permute.xlu0 %1898
      %1900 = vrot.lane.b32.xlu0 %v768, 48
      %v1901 = vpop.permute.xlu0 %1900
      %1902 = vrot.lane.b32.xlu0 %v772, 48
      %v1903 = vpop.permute.xlu0 %1902
      %1904 = vrot.lane.b32.xlu0 %v778, 48
      %v1905 = vpop.permute.xlu0 %1904
      %1906 = vrot.lane.b32.xlu0 %v782, 48
      %v1907 = vpop.permute.xlu0 %1906
      %1908 = vrot.lane.b32.xlu0 %v788, 48
      %v1909 = vpop.permute.xlu0 %1908
      %1910 = vrot.lane.b32.xlu0 %v792, 48
      %v1911 = vpop.permute.xlu0 %1910
      %1912 = vrot.lane.b32.xlu0 %v798, 48
      %v1913 = vpop.permute.xlu0 %1912
      %1914 = vrot.lane.b32.xlu0 %v802, 48
      %v1915 = vpop.permute.xlu0 %1914
      %1916 = vrot.lane.b32.xlu0 %v808, 48
      %v1917 = vpop.permute.xlu0 %1916
      %1918 = vrot.lane.b32.xlu0 %v812, 48
      %v1919 = vpop.permute.xlu0 %1918
      %1920 = vrot.lane.b32.xlu0 %v818, 48
      %v1921 = vpop.permute.xlu0 %1920
      %1922 = vrot.lane.b32.xlu0 %v822, 48
      %v1923 = vpop.permute.xlu0 %1922
      %1924 = vrot.lane.b32.xlu0 %v828, 48
      %v1925 = vpop.permute.xlu0 %1924
      %1926 = vrot.lane.b32.xlu0 %v832, 48
      %v1927 = vpop.permute.xlu0 %1926
      %1928 = vrot.lane.b32.xlu0 %v838, 48
      %v1929 = vpop.permute.xlu0 %1928
      %1930 = vrot.lane.b32.xlu0 %v842, 48
      %v1931 = vpop.permute.xlu0 %1930
      %1932 = vrot.lane.b32.xlu0 %v848, 48
      %v1933 = vpop.permute.xlu0 %1932
      %1934 = vrot.lane.b32.xlu0 %v852, 48
      %v1935 = vpop.permute.xlu0 %1934
      %1936 = vrot.lane.b32.xlu0 %v858, 48
      %v1937 = vpop.permute.xlu0 %1936
      %1938 = vrot.lane.b32.xlu0 %v862, 48
      %v1939 = vpop.permute.xlu0 %1938
      %1940 = vrot.lane.b32.xlu0 %v868, 48
      %v1941 = vpop.permute.xlu0 %1940
      %1942 = vrot.lane.b32.xlu0 %v872, 48
      %v1943 = vpop.permute.xlu0 %1942
      %1944 = vrot.lane.b32.xlu0 %v878, 48
      %v1945 = vpop.permute.xlu0 %1944
      %1946 = vrot.lane.b32.xlu0 %v882, 48
      %v1947 = vpop.permute.xlu0 %1946
      %1948 = vrot.lane.b32.xlu0 %v888, 48
      %v1949 = vpop.permute.xlu0 %1948
      %1950 = vrot.lane.b32.xlu0 %v892, 48
      %v1951 = vpop.permute.xlu0 %1950
      %1952 = vrot.lane.b32.xlu0 %v898, 48
      %v1953 = vpop.permute.xlu0 %1952
      %1954 = vrot.lane.b32.xlu0 %v902, 48
      %v1955 = vpop.permute.xlu0 %1954
      %v1988 = vadd.f32 %v1860, %v1893
      %v1989 = vadd.f32 %v1861, %v1895
      %v1990 = vadd.f32 %v1862, %v1897
      %v1991 = vadd.f32 %v1863, %v1899
      %v1992 = vadd.f32 %v1864, %v1901
      %v1993 = vadd.f32 %v1865, %v1903
      %v1994 = vadd.f32 %v1866, %v1905
      %v1995 = vadd.f32 %v1867, %v1907
      %v1996 = vadd.f32 %v1868, %v1909
      %v1997 = vadd.f32 %v1869, %v1911
      %v1998 = vadd.f32 %v1870, %v1913
      %v1999 = vadd.f32 %v1871, %v1915
      %v2000 = vadd.f32 %v1872, %v1917
      %v2001 = vadd.f32 %v1873, %v1919
      %v2002 = vadd.f32 %v1874, %v1921
      %v2003 = vadd.f32 %v1875, %v1923
      %v2004 = vadd.f32 %v1876, %v1925
      %v2005 = vadd.f32 %v1877, %v1927
      %v2006 = vadd.f32 %v1878, %v1929
      %v2007 = vadd.f32 %v1879, %v1931
      %v2008 = vadd.f32 %v1880, %v1933
      %v2009 = vadd.f32 %v1881, %v1935
      %v2010 = vadd.f32 %v1882, %v1937
      %v2011 = vadd.f32 %v1883, %v1939
      %v2012 = vadd.f32 %v1884, %v1941
      %v2013 = vadd.f32 %v1885, %v1943
      %v2014 = vadd.f32 %v1886, %v1945
      %v2015 = vadd.f32 %v1887, %v1947
      %v2016 = vadd.f32 %v1888, %v1949
      %v2017 = vadd.f32 %v1889, %v1951
      %v2018 = vadd.f32 %v1890, %v1953
      %v2019 = vadd.f32 %v1891, %v1955
      %2020 = vst.msk [vmem:[%s1475] sm:$0xff] %vm906, %v1988
      %2021 = vst.msk [vmem:[%s1475 + $0x8] sm:$0xff] %vm906, %v1989
      %2022 = vst.msk [vmem:[%s1475 + $0x18] sm:$0xff] %vm906, %v1990
      %2023 = vst.msk [vmem:[%s1475 + $0x20] sm:$0xff] %vm906, %v1991
      %2024 = vst.msk [vmem:[%s1475 + $0x30] sm:$0xff] %vm906, %v1992
      %2025 = vst.msk [vmem:[%s1475 + $0x38] sm:$0xff] %vm906, %v1993
      %2026 = vst.msk [vmem:[%s1475 + $0x48] sm:$0xff] %vm906, %v1994
      %2027 = vst.msk [vmem:[%s1475 + $0x50] sm:$0xff] %vm906, %v1995
      %2028 = vst.msk [vmem:[%s1475 + $0x60] sm:$0xff] %vm906, %v1996
      %2029 = vst.msk [vmem:[%s1475 + $0x68] sm:$0xff] %vm906, %v1997
      %2030 = vst.msk [vmem:[%s1475 + $0x78] sm:$0xff] %vm906, %v1998
      %2031 = vst.msk [vmem:[%s1475 + $0x80] sm:$0xff] %vm906, %v1999
      %2032 = vst.msk [vmem:[%s1475 + $0x90] sm:$0xff] %vm906, %v2000
      %2033 = vst.msk [vmem:[%s1475 + $0x98] sm:$0xff] %vm906, %v2001
      %2034 = vst.msk [vmem:[%s1475 + $0xa8] sm:$0xff] %vm906, %v2002
      %2035 = vst.msk [vmem:[%s1475 + $0xb0] sm:$0xff] %vm906, %v2003
      %2036 = vst.msk [vmem:[%s1475 + $0xc0] sm:$0xff] %vm906, %v2004
      %2037 = vst.msk [vmem:[%s1475 + $0xc8] sm:$0xff] %vm906, %v2005
      %2038 = vst.msk [vmem:[%s1475 + $0xd8] sm:$0xff] %vm906, %v2006
      %2039 = vst.msk [vmem:[%s1475 + $0xe0] sm:$0xff] %vm906, %v2007
      %2040 = vst.msk [vmem:[%s1475 + $0xf0] sm:$0xff] %vm906, %v2008
      %2041 = vst.msk [vmem:[%s1475 + $0xf8] sm:$0xff] %vm906, %v2009
      %2042 = vst.msk [vmem:[%s1475 + $0x108] sm:$0xff] %vm906, %v2010
      %2043 = vst.msk [vmem:[%s1475 + $0x110] sm:$0xff] %vm906, %v2011
      %2044 = vst.msk [vmem:[%s1475 + $0x120] sm:$0xff] %vm906, %v2012
      %2045 = vst.msk [vmem:[%s1475 + $0x128] sm:$0xff] %vm906, %v2013
      %2046 = vst.msk [vmem:[%s1475 + $0x138] sm:$0xff] %vm906, %v2014
      %2047 = vst.msk [vmem:[%s1475 + $0x140] sm:$0xff] %vm906, %v2015
      %2048 = vst.msk [vmem:[%s1475 + $0x150] sm:$0xff] %vm906, %v2016
      %2049 = vst.msk [vmem:[%s1475 + $0x158] sm:$0xff] %vm906, %v2017
      %2050 = vst.msk [vmem:[%s1475 + $0x168] sm:$0xff] %vm906, %v2018
      %2051 = vst.msk [vmem:[%s1475 + $0x170] sm:$0xff] %vm906, %v2019
      %v2052 = vld [vmem:[%s197 + $0x2] sm:$0xff]
      %v2053 = vld [vmem:[%s197 + $0xa] sm:$0xff]
      %v2054 = vld [vmem:[%s197 + $0x1a] sm:$0xff]
      %v2055 = vld [vmem:[%s197 + $0x22] sm:$0xff]
      %v2056 = vld [vmem:[%s197 + $0x32] sm:$0xff]
      %v2057 = vld [vmem:[%s197 + $0x3a] sm:$0xff]
      %v2058 = vld [vmem:[%s197 + $0x4a] sm:$0xff]
      %v2059 = vld [vmem:[%s197 + $0x52] sm:$0xff]
      %v2060 = vld [vmem:[%s197 + $0x62] sm:$0xff]
      %v2061 = vld [vmem:[%s197 + $0x6a] sm:$0xff]
      %v2062 = vld [vmem:[%s197 + $0x7a] sm:$0xff]
      %v2063 = vld [vmem:[%s197 + $0x82] sm:$0xff]
      %v2064 = vld [vmem:[%s197 + $0x92] sm:$0xff]
      %v2065 = vld [vmem:[%s197 + $0x9a] sm:$0xff]
      %v2066 = vld [vmem:[%s197 + $0xaa] sm:$0xff]
      %v2067 = vld [vmem:[%s197 + $0xb2] sm:$0xff]
      %v2068 = vld [vmem:[%s197 + $0xc2] sm:$0xff]
      %v2069 = vld [vmem:[%s197 + $0xca] sm:$0xff]
      %v2070 = vld [vmem:[%s197 + $0xda] sm:$0xff]
      %v2071 = vld [vmem:[%s197 + $0xe2] sm:$0xff]
      %v2072 = vld [vmem:[%s197 + $0xf2] sm:$0xff]
      %v2073 = vld [vmem:[%s197 + $0xfa] sm:$0xff]
      %v2074 = vld [vmem:[%s197 + $0x10a] sm:$0xff]
      %v2075 = vld [vmem:[%s197 + $0x112] sm:$0xff]
      %v2076 = vld [vmem:[%s197 + $0x122] sm:$0xff]
      %v2077 = vld [vmem:[%s197 + $0x12a] sm:$0xff]
      %v2078 = vld [vmem:[%s197 + $0x13a] sm:$0xff]
      %v2079 = vld [vmem:[%s197 + $0x142] sm:$0xff]
      %v2080 = vld [vmem:[%s197 + $0x152] sm:$0xff]
      %v2081 = vld [vmem:[%s197 + $0x15a] sm:$0xff]
      %v2082 = vld [vmem:[%s197 + $0x16a] sm:$0xff]
      %v2083 = vld [vmem:[%s197 + $0x172] sm:$0xff]
      %2084 = vrot.lane.b32.xlu0 %v748, 32
      %v2085 = vpop.permute.xlu0 %2084
      %2086 = vrot.lane.b32.xlu0 %v752, 32
      %v2087 = vpop.permute.xlu0 %2086
      %2088 = vrot.lane.b32.xlu0 %v758, 32
      %v2089 = vpop.permute.xlu0 %2088
      %2090 = vrot.lane.b32.xlu0 %v762, 32
      %v2091 = vpop.permute.xlu0 %2090
      %2092 = vrot.lane.b32.xlu0 %v768, 32
      %v2093 = vpop.permute.xlu0 %2092
      %2094 = vrot.lane.b32.xlu0 %v772, 32
      %v2095 = vpop.permute.xlu0 %2094
      %2096 = vrot.lane.b32.xlu0 %v778, 32
      %v2097 = vpop.permute.xlu0 %2096
      %2098 = vrot.lane.b32.xlu0 %v782, 32
      %v2099 = vpop.permute.xlu0 %2098
      %2100 = vrot.lane.b32.xlu0 %v788, 32
      %v2101 = vpop.permute.xlu0 %2100
      %2102 = vrot.lane.b32.xlu0 %v792, 32
      %v2103 = vpop.permute.xlu0 %2102
      %2104 = vrot.lane.b32.xlu0 %v798, 32
      %v2105 = vpop.permute.xlu0 %2104
      %2106 = vrot.lane.b32.xlu0 %v802, 32
      %v2107 = vpop.permute.xlu0 %2106
      %2108 = vrot.lane.b32.xlu0 %v808, 32
      %v2109 = vpop.permute.xlu0 %2108
      %2110 = vrot.lane.b32.xlu0 %v812, 32
      %v2111 = vpop.permute.xlu0 %2110
      %2112 = vrot.lane.b32.xlu0 %v818, 32
      %v2113 = vpop.permute.xlu0 %2112
      %2114 = vrot.lane.b32.xlu0 %v822, 32
      %v2115 = vpop.permute.xlu0 %2114
      %2116 = vrot.lane.b32.xlu0 %v828, 32
      %v2117 = vpop.permute.xlu0 %2116
      %2118 = vrot.lane.b32.xlu0 %v832, 32
      %v2119 = vpop.permute.xlu0 %2118
      %2120 = vrot.lane.b32.xlu0 %v838, 32
      %v2121 = vpop.permute.xlu0 %2120
      %2122 = vrot.lane.b32.xlu0 %v842, 32
      %v2123 = vpop.permute.xlu0 %2122
      %2124 = vrot.lane.b32.xlu0 %v848, 32
      %v2125 = vpop.permute.xlu0 %2124
      %2126 = vrot.lane.b32.xlu0 %v852, 32
      %v2127 = vpop.permute.xlu0 %2126
      %2128 = vrot.lane.b32.xlu0 %v858, 32
      %v2129 = vpop.permute.xlu0 %2128
      %2130 = vrot.lane.b32.xlu0 %v862, 32
      %v2131 = vpop.permute.xlu0 %2130
      %2132 = vrot.lane.b32.xlu0 %v868, 32
      %v2133 = vpop.permute.xlu0 %2132
      %2134 = vrot.lane.b32.xlu0 %v872, 32
      %v2135 = vpop.permute.xlu0 %2134
      %2136 = vrot.lane.b32.xlu0 %v878, 32
      %v2137 = vpop.permute.xlu0 %2136
      %2138 = vrot.lane.b32.xlu0 %v882, 32
      %v2139 = vpop.permute.xlu0 %2138
      %2140 = vrot.lane.b32.xlu0 %v888, 32
      %v2141 = vpop.permute.xlu0 %2140
      %2142 = vrot.lane.b32.xlu0 %v892, 32
      %v2143 = vpop.permute.xlu0 %2142
      %2144 = vrot.lane.b32.xlu0 %v898, 32
      %v2145 = vpop.permute.xlu0 %2144
      %2146 = vrot.lane.b32.xlu0 %v902, 32
      %v2147 = vpop.permute.xlu0 %2146
      %v2180 = vadd.f32 %v2052, %v2085
      %v2181 = vadd.f32 %v2053, %v2087
      %v2182 = vadd.f32 %v2054, %v2089
      %v2183 = vadd.f32 %v2055, %v2091
      %v2184 = vadd.f32 %v2056, %v2093
      %v2185 = vadd.f32 %v2057, %v2095
      %v2186 = vadd.f32 %v2058, %v2097
      %v2187 = vadd.f32 %v2059, %v2099
      %v2188 = vadd.f32 %v2060, %v2101
      %v2189 = vadd.f32 %v2061, %v2103
      %v2190 = vadd.f32 %v2062, %v2105
      %v2191 = vadd.f32 %v2063, %v2107
      %v2192 = vadd.f32 %v2064, %v2109
      %v2193 = vadd.f32 %v2065, %v2111
      %v2194 = vadd.f32 %v2066, %v2113
      %v2195 = vadd.f32 %v2067, %v2115
      %v2196 = vadd.f32 %v2068, %v2117
      %v2197 = vadd.f32 %v2069, %v2119
      %v2198 = vadd.f32 %v2070, %v2121
      %v2199 = vadd.f32 %v2071, %v2123
      %v2200 = vadd.f32 %v2072, %v2125
      %v2201 = vadd.f32 %v2073, %v2127
      %v2202 = vadd.f32 %v2074, %v2129
      %v2203 = vadd.f32 %v2075, %v2131
      %v2204 = vadd.f32 %v2076, %v2133
      %v2205 = vadd.f32 %v2077, %v2135
      %v2206 = vadd.f32 %v2078, %v2137
      %v2207 = vadd.f32 %v2079, %v2139
      %v2208 = vadd.f32 %v2080, %v2141
      %v2209 = vadd.f32 %v2081, %v2143
      %v2210 = vadd.f32 %v2082, %v2145
      %v2211 = vadd.f32 %v2083, %v2147
      %2212 = vst.msk [vmem:[%s197 + $0x2] sm:$0xff] %vm906, %v2180
      %2213 = vst.msk [vmem:[%s197 + $0xa] sm:$0xff] %vm906, %v2181
      %2214 = vst.msk [vmem:[%s197 + $0x1a] sm:$0xff] %vm906, %v2182
      %2215 = vst.msk [vmem:[%s197 + $0x22] sm:$0xff] %vm906, %v2183
      %2216 = vst.msk [vmem:[%s197 + $0x32] sm:$0xff] %vm906, %v2184
      %2217 = vst.msk [vmem:[%s197 + $0x3a] sm:$0xff] %vm906, %v2185
      %2218 = vst.msk [vmem:[%s197 + $0x4a] sm:$0xff] %vm906, %v2186
      %2219 = vst.msk [vmem:[%s197 + $0x52] sm:$0xff] %vm906, %v2187
      %2220 = vst.msk [vmem:[%s197 + $0x62] sm:$0xff] %vm906, %v2188
      %2221 = vst.msk [vmem:[%s197 + $0x6a] sm:$0xff] %vm906, %v2189
      %2222 = vst.msk [vmem:[%s197 + $0x7a] sm:$0xff] %vm906, %v2190
      %2223 = vst.msk [vmem:[%s197 + $0x82] sm:$0xff] %vm906, %v2191
      %2224 = vst.msk [vmem:[%s197 + $0x92] sm:$0xff] %vm906, %v2192
      %2225 = vst.msk [vmem:[%s197 + $0x9a] sm:$0xff] %vm906, %v2193
      %2226 = vst.msk [vmem:[%s197 + $0xaa] sm:$0xff] %vm906, %v2194
      %2227 = vst.msk [vmem:[%s197 + $0xb2] sm:$0xff] %vm906, %v2195
      %2228 = vst.msk [vmem:[%s197 + $0xc2] sm:$0xff] %vm906, %v2196
      %2229 = vst.msk [vmem:[%s197 + $0xca] sm:$0xff] %vm906, %v2197
      %2230 = vst.msk [vmem:[%s197 + $0xda] sm:$0xff] %vm906, %v2198
      %2231 = vst.msk [vmem:[%s197 + $0xe2] sm:$0xff] %vm906, %v2199
      %2232 = vst.msk [vmem:[%s197 + $0xf2] sm:$0xff] %vm906, %v2200
      %2233 = vst.msk [vmem:[%s197 + $0xfa] sm:$0xff] %vm906, %v2201
      %2234 = vst.msk [vmem:[%s197 + $0x10a] sm:$0xff] %vm906, %v2202
      %2235 = vst.msk [vmem:[%s197 + $0x112] sm:$0xff] %vm906, %v2203
      %2236 = vst.msk [vmem:[%s197 + $0x122] sm:$0xff] %vm906, %v2204
      %2237 = vst.msk [vmem:[%s197 + $0x12a] sm:$0xff] %vm906, %v2205
      %2238 = vst.msk [vmem:[%s197 + $0x13a] sm:$0xff] %vm906, %v2206
      %2239 = vst.msk [vmem:[%s197 + $0x142] sm:$0xff] %vm906, %v2207
      %2240 = vst.msk [vmem:[%s197 + $0x152] sm:$0xff] %vm906, %v2208
      %2241 = vst.msk [vmem:[%s197 + $0x15a] sm:$0xff] %vm906, %v2209
      %2242 = vst.msk [vmem:[%s197 + $0x16a] sm:$0xff] %vm906, %v2210
      %2243 = vst.msk [vmem:[%s197 + $0x172] sm:$0xff] %vm906, %v2211
      %v2244 = vld [vmem:[%s197 + $0x1] sm:$0xff]
      %v2245 = vld [vmem:[%s197 + $0x9] sm:$0xff]
      %v2246 = vld [vmem:[%s197 + $0x19] sm:$0xff]
      %v2247 = vld [vmem:[%s197 + $0x21] sm:$0xff]
      %v2248 = vld [vmem:[%s197 + $0x31] sm:$0xff]
      %v2249 = vld [vmem:[%s197 + $0x39] sm:$0xff]
      %v2250 = vld [vmem:[%s197 + $0x49] sm:$0xff]
      %v2251 = vld [vmem:[%s197 + $0x51] sm:$0xff]
      %v2252 = vld [vmem:[%s197 + $0x61] sm:$0xff]
      %v2253 = vld [vmem:[%s197 + $0x69] sm:$0xff]
      %v2254 = vld [vmem:[%s197 + $0x79] sm:$0xff]
      %v2255 = vld [vmem:[%s197 + $0x81] sm:$0xff]
      %v2256 = vld [vmem:[%s197 + $0x91] sm:$0xff]
      %v2257 = vld [vmem:[%s197 + $0x99] sm:$0xff]
      %v2258 = vld [vmem:[%s197 + $0xa9] sm:$0xff]
      %v2259 = vld [vmem:[%s197 + $0xb1] sm:$0xff]
      %v2260 = vld [vmem:[%s197 + $0xc1] sm:$0xff]
      %v2261 = vld [vmem:[%s197 + $0xc9] sm:$0xff]
      %v2262 = vld [vmem:[%s197 + $0xd9] sm:$0xff]
      %v2263 = vld [vmem:[%s197 + $0xe1] sm:$0xff]
      %v2264 = vld [vmem:[%s197 + $0xf1] sm:$0xff]
      %v2265 = vld [vmem:[%s197 + $0xf9] sm:$0xff]
      %v2266 = vld [vmem:[%s197 + $0x109] sm:$0xff]
      %v2267 = vld [vmem:[%s197 + $0x111] sm:$0xff]
      %v2268 = vld [vmem:[%s197 + $0x121] sm:$0xff]
      %v2269 = vld [vmem:[%s197 + $0x129] sm:$0xff]
      %v2270 = vld [vmem:[%s197 + $0x139] sm:$0xff]
      %v2271 = vld [vmem:[%s197 + $0x141] sm:$0xff]
      %v2272 = vld [vmem:[%s197 + $0x151] sm:$0xff]
      %v2273 = vld [vmem:[%s197 + $0x159] sm:$0xff]
      %v2274 = vld [vmem:[%s197 + $0x169] sm:$0xff]
      %v2275 = vld [vmem:[%s197 + $0x171] sm:$0xff]
      %2276 = vrot.lane.b32.xlu0 %v748, 16
      %v2277 = vpop.permute.xlu0 %2276
      %2278 = vrot.lane.b32.xlu0 %v752, 16
      %v2279 = vpop.permute.xlu0 %2278
      %2280 = vrot.lane.b32.xlu0 %v758, 16
      %v2281 = vpop.permute.xlu0 %2280
      %2282 = vrot.lane.b32.xlu0 %v762, 16
      %v2283 = vpop.permute.xlu0 %2282
      %2284 = vrot.lane.b32.xlu0 %v768, 16
      %v2285 = vpop.permute.xlu0 %2284
      %2286 = vrot.lane.b32.xlu0 %v772, 16
      %v2287 = vpop.permute.xlu0 %2286
      %2288 = vrot.lane.b32.xlu0 %v778, 16
      %v2289 = vpop.permute.xlu0 %2288
      %2290 = vrot.lane.b32.xlu0 %v782, 16
      %v2291 = vpop.permute.xlu0 %2290
      %2292 = vrot.lane.b32.xlu0 %v788, 16
      %v2293 = vpop.permute.xlu0 %2292
      %2294 = vrot.lane.b32.xlu0 %v792, 16
      %v2295 = vpop.permute.xlu0 %2294
      %2296 = vrot.lane.b32.xlu0 %v798, 16
      %v2297 = vpop.permute.xlu0 %2296
      %2298 = vrot.lane.b32.xlu0 %v802, 16
      %v2299 = vpop.permute.xlu0 %2298
      %2300 = vrot.lane.b32.xlu0 %v808, 16
      %v2301 = vpop.permute.xlu0 %2300
      %2302 = vrot.lane.b32.xlu0 %v812, 16
      %v2303 = vpop.permute.xlu0 %2302
      %2304 = vrot.lane.b32.xlu0 %v818, 16
      %v2305 = vpop.permute.xlu0 %2304
      %2306 = vrot.lane.b32.xlu0 %v822, 16
      %v2307 = vpop.permute.xlu0 %2306
      %2308 = vrot.lane.b32.xlu0 %v828, 16
      %v2309 = vpop.permute.xlu0 %2308
      %2310 = vrot.lane.b32.xlu0 %v832, 16
      %v2311 = vpop.permute.xlu0 %2310
      %2312 = vrot.lane.b32.xlu0 %v838, 16
      %v2313 = vpop.permute.xlu0 %2312
      %2314 = vrot.lane.b32.xlu0 %v842, 16
      %v2315 = vpop.permute.xlu0 %2314
      %2316 = vrot.lane.b32.xlu0 %v848, 16
      %v2317 = vpop.permute.xlu0 %2316
      %2318 = vrot.lane.b32.xlu0 %v852, 16
      %v2319 = vpop.permute.xlu0 %2318
      %2320 = vrot.lane.b32.xlu0 %v858, 16
      %v2321 = vpop.permute.xlu0 %2320
      %2322 = vrot.lane.b32.xlu0 %v862, 16
      %v2323 = vpop.permute.xlu0 %2322
      %2324 = vrot.lane.b32.xlu0 %v868, 16
      %v2325 = vpop.permute.xlu0 %2324
      %2326 = vrot.lane.b32.xlu0 %v872, 16
      %v2327 = vpop.permute.xlu0 %2326
      %2328 = vrot.lane.b32.xlu0 %v878, 16
      %v2329 = vpop.permute.xlu0 %2328
      %2330 = vrot.lane.b32.xlu0 %v882, 16
      %v2331 = vpop.permute.xlu0 %2330
      %2332 = vrot.lane.b32.xlu0 %v888, 16
      %v2333 = vpop.permute.xlu0 %2332
      %2334 = vrot.lane.b32.xlu0 %v892, 16
      %v2335 = vpop.permute.xlu0 %2334
      %2336 = vrot.lane.b32.xlu0 %v898, 16
      %v2337 = vpop.permute.xlu0 %2336
      %2338 = vrot.lane.b32.xlu0 %v902, 16
      %v2339 = vpop.permute.xlu0 %2338
      %v2372 = vadd.f32 %v2244, %v2277
      %v2373 = vadd.f32 %v2245, %v2279
      %v2374 = vadd.f32 %v2246, %v2281
      %v2375 = vadd.f32 %v2247, %v2283
      %v2376 = vadd.f32 %v2248, %v2285
      %v2377 = vadd.f32 %v2249, %v2287
      %v2378 = vadd.f32 %v2250, %v2289
      %v2379 = vadd.f32 %v2251, %v2291
      %v2380 = vadd.f32 %v2252, %v2293
      %v2381 = vadd.f32 %v2253, %v2295
      %v2382 = vadd.f32 %v2254, %v2297
      %v2383 = vadd.f32 %v2255, %v2299
      %v2384 = vadd.f32 %v2256, %v2301
      %v2385 = vadd.f32 %v2257, %v2303
      %v2386 = vadd.f32 %v2258, %v2305
      %v2387 = vadd.f32 %v2259, %v2307
      %v2388 = vadd.f32 %v2260, %v2309
      %v2389 = vadd.f32 %v2261, %v2311
      %v2390 = vadd.f32 %v2262, %v2313
      %v2391 = vadd.f32 %v2263, %v2315
      %v2392 = vadd.f32 %v2264, %v2317
      %v2393 = vadd.f32 %v2265, %v2319
      %v2394 = vadd.f32 %v2266, %v2321
      %v2395 = vadd.f32 %v2267, %v2323
      %v2396 = vadd.f32 %v2268, %v2325
      %v2397 = vadd.f32 %v2269, %v2327
      %v2398 = vadd.f32 %v2270, %v2329
      %v2399 = vadd.f32 %v2271, %v2331
      %v2400 = vadd.f32 %v2272, %v2333
      %v2401 = vadd.f32 %v2273, %v2335
      %v2402 = vadd.f32 %v2274, %v2337
      %v2403 = vadd.f32 %v2275, %v2339
      %2404 = vst.msk [vmem:[%s197 + $0x1] sm:$0xff] %vm906, %v2372
      %2405 = vst.msk [vmem:[%s197 + $0x9] sm:$0xff] %vm906, %v2373
      %2406 = vst.msk [vmem:[%s197 + $0x19] sm:$0xff] %vm906, %v2374
      %2407 = vst.msk [vmem:[%s197 + $0x21] sm:$0xff] %vm906, %v2375
      %2408 = vst.msk [vmem:[%s197 + $0x31] sm:$0xff] %vm906, %v2376
      %2409 = vst.msk [vmem:[%s197 + $0x39] sm:$0xff] %vm906, %v2377
      %2410 = vst.msk [vmem:[%s197 + $0x49] sm:$0xff] %vm906, %v2378
      %2411 = vst.msk [vmem:[%s197 + $0x51] sm:$0xff] %vm906, %v2379
      %2412 = vst.msk [vmem:[%s197 + $0x61] sm:$0xff] %vm906, %v2380
      %2413 = vst.msk [vmem:[%s197 + $0x69] sm:$0xff] %vm906, %v2381
      %2414 = vst.msk [vmem:[%s197 + $0x79] sm:$0xff] %vm906, %v2382
      %2415 = vst.msk [vmem:[%s197 + $0x81] sm:$0xff] %vm906, %v2383
      %2416 = vst.msk [vmem:[%s197 + $0x91] sm:$0xff] %vm906, %v2384
      %2417 = vst.msk [vmem:[%s197 + $0x99] sm:$0xff] %vm906, %v2385
      %2418 = vst.msk [vmem:[%s197 + $0xa9] sm:$0xff] %vm906, %v2386
      %2419 = vst.msk [vmem:[%s197 + $0xb1] sm:$0xff] %vm906, %v2387
      %2420 = vst.msk [vmem:[%s197 + $0xc1] sm:$0xff] %vm906, %v2388
      %2421 = vst.msk [vmem:[%s197 + $0xc9] sm:$0xff] %vm906, %v2389
      %2422 = vst.msk [vmem:[%s197 + $0xd9] sm:$0xff] %vm906, %v2390
      %2423 = vst.msk [vmem:[%s197 + $0xe1] sm:$0xff] %vm906, %v2391
      %2424 = vst.msk [vmem:[%s197 + $0xf1] sm:$0xff] %vm906, %v2392
      %2425 = vst.msk [vmem:[%s197 + $0xf9] sm:$0xff] %vm906, %v2393
      %2426 = vst.msk [vmem:[%s197 + $0x109] sm:$0xff] %vm906, %v2394
      %2427 = vst.msk [vmem:[%s197 + $0x111] sm:$0xff] %vm906, %v2395
      %2428 = vst.msk [vmem:[%s197 + $0x121] sm:$0xff] %vm906, %v2396
      %2429 = vst.msk [vmem:[%s197 + $0x129] sm:$0xff] %vm906, %v2397
      %2430 = vst.msk [vmem:[%s197 + $0x139] sm:$0xff] %vm906, %v2398
      %2431 = vst.msk [vmem:[%s197 + $0x141] sm:$0xff] %vm906, %v2399
      %2432 = vst.msk [vmem:[%s197 + $0x151] sm:$0xff] %vm906, %v2400
      %2433 = vst.msk [vmem:[%s197 + $0x159] sm:$0xff] %vm906, %v2401
      %2434 = vst.msk [vmem:[%s197 + $0x169] sm:$0xff] %vm906, %v2402
      %2435 = vst.msk [vmem:[%s197 + $0x171] sm:$0xff] %vm906, %v2403
      %v2436 = vld [vmem:[%s197] sm:$0xff]
      %v2437 = vld [vmem:[%s197 + $0x8] sm:$0xff]
      %v2438 = vld [vmem:[%s197 + $0x18] sm:$0xff]
      %v2439 = vld [vmem:[%s197 + $0x20] sm:$0xff]
      %v2440 = vld [vmem:[%s197 + $0x30] sm:$0xff]
      %v2441 = vld [vmem:[%s197 + $0x38] sm:$0xff]
      %v2442 = vld [vmem:[%s197 + $0x48] sm:$0xff]
      %v2443 = vld [vmem:[%s197 + $0x50] sm:$0xff]
      %v2444 = vld [vmem:[%s197 + $0x60] sm:$0xff]
      %v2445 = vld [vmem:[%s197 + $0x68] sm:$0xff]
      %v2446 = vld [vmem:[%s197 + $0x78] sm:$0xff]
      %v2447 = vld [vmem:[%s197 + $0x80] sm:$0xff]
      %v2448 = vld [vmem:[%s197 + $0x90] sm:$0xff]
      %v2449 = vld [vmem:[%s197 + $0x98] sm:$0xff]
      %v2450 = vld [vmem:[%s197 + $0xa8] sm:$0xff]
      %v2451 = vld [vmem:[%s197 + $0xb0] sm:$0xff]
      %v2452 = vld [vmem:[%s197 + $0xc0] sm:$0xff]
      %v2453 = vld [vmem:[%s197 + $0xc8] sm:$0xff]
      %v2454 = vld [vmem:[%s197 + $0xd8] sm:$0xff]
      %v2455 = vld [vmem:[%s197 + $0xe0] sm:$0xff]
      %v2456 = vld [vmem:[%s197 + $0xf0] sm:$0xff]
      %v2457 = vld [vmem:[%s197 + $0xf8] sm:$0xff]
      %v2458 = vld [vmem:[%s197 + $0x108] sm:$0xff]
      %v2459 = vld [vmem:[%s197 + $0x110] sm:$0xff]
      %v2460 = vld [vmem:[%s197 + $0x120] sm:$0xff]
      %v2461 = vld [vmem:[%s197 + $0x128] sm:$0xff]
      %v2462 = vld [vmem:[%s197 + $0x138] sm:$0xff]
      %v2463 = vld [vmem:[%s197 + $0x140] sm:$0xff]
      %v2464 = vld [vmem:[%s197 + $0x150] sm:$0xff]
      %v2465 = vld [vmem:[%s197 + $0x158] sm:$0xff]
      %v2466 = vld [vmem:[%s197 + $0x168] sm:$0xff]
      %v2467 = vld [vmem:[%s197 + $0x170] sm:$0xff]
      %v2468 = vadd.f32 %v2436, %v750
      %v2469 = vadd.f32 %v2437, %v754
      %v2470 = vadd.f32 %v2438, %v760
      %v2471 = vadd.f32 %v2439, %v764
      %v2472 = vadd.f32 %v2440, %v770
      %v2473 = vadd.f32 %v2441, %v774
      %v2474 = vadd.f32 %v2442, %v780
      %v2475 = vadd.f32 %v2443, %v784
      %v2476 = vadd.f32 %v2444, %v790
      %v2477 = vadd.f32 %v2445, %v794
      %v2478 = vadd.f32 %v2446, %v800
      %v2479 = vadd.f32 %v2447, %v804
      %v2480 = vadd.f32 %v2448, %v810
      %v2481 = vadd.f32 %v2449, %v814
      %v2482 = vadd.f32 %v2450, %v820
      %v2483 = vadd.f32 %v2451, %v824
      %v2484 = vadd.f32 %v2452, %v830
      %v2485 = vadd.f32 %v2453, %v834
      %v2486 = vadd.f32 %v2454, %v840
      %v2487 = vadd.f32 %v2455, %v844
      %v2488 = vadd.f32 %v2456, %v850
      %v2489 = vadd.f32 %v2457, %v854
      %v2490 = vadd.f32 %v2458, %v860
      %v2491 = vadd.f32 %v2459, %v864
      %v2492 = vadd.f32 %v2460, %v870
      %v2493 = vadd.f32 %v2461, %v874
      %v2494 = vadd.f32 %v2462, %v880
      %v2495 = vadd.f32 %v2463, %v884
      %v2496 = vadd.f32 %v2464, %v890
      %v2497 = vadd.f32 %v2465, %v894
      %v2498 = vadd.f32 %v2466, %v900
      %v2499 = vadd.f32 %v2467, %v904
      %2500 = vst.msk [vmem:[%s197] sm:$0xff] %vm906, %v2468
      %2501 = vst.msk [vmem:[%s197 + $0x8] sm:$0xff] %vm906, %v2469
      %2502 = vst.msk [vmem:[%s197 + $0x18] sm:$0xff] %vm906, %v2470
      %2503 = vst.msk [vmem:[%s197 + $0x20] sm:$0xff] %vm906, %v2471
      %2504 = vst.msk [vmem:[%s197 + $0x30] sm:$0xff] %vm906, %v2472
      %2505 = vst.msk [vmem:[%s197 + $0x38] sm:$0xff] %vm906, %v2473
      %2506 = vst.msk [vmem:[%s197 + $0x48] sm:$0xff] %vm906, %v2474
      %2507 = vst.msk [vmem:[%s197 + $0x50] sm:$0xff] %vm906, %v2475
      %2508 = vst.msk [vmem:[%s197 + $0x60] sm:$0xff] %vm906, %v2476
      %2509 = vst.msk [vmem:[%s197 + $0x68] sm:$0xff] %vm906, %v2477
      %2510 = vst.msk [vmem:[%s197 + $0x78] sm:$0xff] %vm906, %v2478
      %2511 = vst.msk [vmem:[%s197 + $0x80] sm:$0xff] %vm906, %v2479
      %2512 = vst.msk [vmem:[%s197 + $0x90] sm:$0xff] %vm906, %v2480
      %2513 = vst.msk [vmem:[%s197 + $0x98] sm:$0xff] %vm906, %v2481
      %2514 = vst.msk [vmem:[%s197 + $0xa8] sm:$0xff] %vm906, %v2482
      %2515 = vst.msk [vmem:[%s197 + $0xb0] sm:$0xff] %vm906, %v2483
      %2516 = vst.msk [vmem:[%s197 + $0xc0] sm:$0xff] %vm906, %v2484
      %2517 = vst.msk [vmem:[%s197 + $0xc8] sm:$0xff] %vm906, %v2485
      %2518 = vst.msk [vmem:[%s197 + $0xd8] sm:$0xff] %vm906, %v2486
      %2519 = vst.msk [vmem:[%s197 + $0xe0] sm:$0xff] %vm906, %v2487
      %2520 = vst.msk [vmem:[%s197 + $0xf0] sm:$0xff] %vm906, %v2488
      %2521 = vst.msk [vmem:[%s197 + $0xf8] sm:$0xff] %vm906, %v2489
      %2522 = vst.msk [vmem:[%s197 + $0x108] sm:$0xff] %vm906, %v2490
      %2523 = vst.msk [vmem:[%s197 + $0x110] sm:$0xff] %vm906, %v2491
      %2524 = vst.msk [vmem:[%s197 + $0x120] sm:$0xff] %vm906, %v2492
      %2525 = vst.msk [vmem:[%s197 + $0x128] sm:$0xff] %vm906, %v2493
      %2526 = vst.msk [vmem:[%s197 + $0x138] sm:$0xff] %vm906, %v2494
      %2527 = vst.msk [vmem:[%s197 + $0x140] sm:$0xff] %vm906, %v2495
      %2528 = vst.msk [vmem:[%s197 + $0x150] sm:$0xff] %vm906, %v2496
      %2529 = vst.msk [vmem:[%s197 + $0x158] sm:$0xff] %vm906, %v2497
      %2530 = vst.msk [vmem:[%s197 + $0x168] sm:$0xff] %vm906, %v2498
      %2531 = vst.msk [vmem:[%s197 + $0x170] sm:$0xff] %vm906, %v2499
      %p2532 = scmp.lt.s32.totalorder %s15, 1
      %s2533 = scalar_select %p2532, %s15, 1
      %s2534 = smul.addr %s2533, 54
      %s2535 = smul.addr %s2534, 8
      %s2536 = scalar_lea.vmem %s4, %s2535
      // Predicated region
      $region37: #{tpu_custom_call.1} parent=35 // pred_check
        %p2537 = pneg %p122
      $region38: #{tpu_custom_call.1} parent=35 // pred_check_branch
        %2539 = sbr.rel (%p2537) target = $region40
      $region39: #{tpu_custom_call.1} parent=35 // pred_region
        _
      $region40: #{tpu_custom_call.1} parent=35 // pred_fallthru
        _
    $region36: #{tpu_custom_call.1} parent=5 // pred_fallthru
      _
    %p2540 = scmp.le.s32.totalorder 2, %s10
    // Predicated region
    $region41: #{tpu_custom_call.1} parent=5 // pred_check
      %p2541 = pneg %p2540
    $region42: #{tpu_custom_call.1} parent=5 // pred_check_branch
      %2543 = sbr.rel (%p2541) target = $region44
    $region43: #{tpu_custom_call.1} parent=5 // pred_region
      %s2544 = ssub.s32 %s10, 2
      // Predicated region
      $region45: #{tpu_custom_call.1} parent=43 // pred_check
        %p2545 = pneg %p128
      $region46: #{tpu_custom_call.1} parent=43 // pred_check_branch
        %2547 = sbr.rel (%p2545) target = $region48
      $region47: #{tpu_custom_call.1} parent=43 // pred_region
        %p2548 = scmp.lt.s32.totalorder %s16, 1
        %s2549 = scalar_select %p2548, %s16, 1
        %s2550 = smul.addr %s2549, 54
        %s2551 = smul.addr %s2550, 8
        %s2552 = scalar_lea.vmem %s4, %s2551
      $region48: #{tpu_custom_call.1} parent=43 // pred_fallthru
        _
    $region44: #{tpu_custom_call.1} parent=5 // pred_fallthru
      _
  $region6: #{tpu_custom_call.1} parent=0 // loop_footer
    %s14 = sadd.s32 1, %s10
  $region7: #{tpu_custom_call.1} parent=0 // loop_footer_branch
    %9 = sbr.rel target = $region3
  $region8: #{tpu_custom_call.1} parent=0 // loop_exit
    _

</llo_original>
